<compile_context>
chip_gen: v7x
topology: tpu7x:2x2x1
jax: 0.10.0
libtpu: 0.0.40
codegen_flags: <defaults>
</compile_context>

<pallas_src>
import jax
import jax.numpy as jnp
from jax import lax
from jax.experimental import pallas as pl
from jax.experimental.pallas import tpu as pltpu


# ---------------------------------------------------------------------------
# Kernel 1: gates_x = x @ W_ih + b      (tiled GEMM, bf16 in / f32 accum / bf16 out)
# ---------------------------------------------------------------------------
def _proj_kernel(x_ref, w_ref, b_ref, o_ref, acc_ref):
    @pl.when(pl.program_id(2) == 0)
    def _():
        acc_ref[...] = jnp.zeros_like(acc_ref)

    acc_ref[...] += jnp.dot(x_ref[...], w_ref[...],
                            preferred_element_type=jnp.float32)

    @pl.when(pl.program_id(2) == pl.num_programs(2) - 1)
    def _():
        # Bias added once in f32, then the intermediate is demoted to bf16 for HBM.
        o_ref[...] = (acc_ref[...] + b_ref[...]).astype(o_ref.dtype)


# ---------------------------------------------------------------------------
# Kernel 2: LSTM recurrence over time chunks + classifier head
# ---------------------------------------------------------------------------
def _recurrence_kernel(len_sref,                       # SMEM (B,) int32 (scalar prefetch)
                       gx_ref, w_hh_ref, len_vref, w_fc_ref, b_fc_ref,
                       out_ref, h_scr, c_scr):
    bb, H = h_scr.shape
    Tc = gx_ref.shape[0]
    bi = pl.program_id(0)          # batch block
    tc = pl.program_id(1)          # time chunk

    @pl.when(tc == 0)
    def _():
        h_scr[...] = jnp.zeros_like(h_scr)
        c_scr[...] = jnp.zeros_like(c_scr)

    # Lengths are sorted descending (pack_padded_sequence enforce_sorted=True), so the
    # first element of this batch block is the block's max length.
    block_max_len = len_sref[bi * bb]
    t0 = tc * Tc
    lens = len_vref[...]           # (bb, 1) int32

    @pl.when(t0 < block_max_len)   # skip chunks that are pure padding for this block
    def _():
        def step(i, carry):
            h, c = carry
            t = t0 + i
            gates = (gx_ref[i].astype(jnp.float32) +
                     jnp.dot(h.astype(jnp.bfloat16), w_hh_ref[...],
                             preferred_element_type=jnp.float32))
            i_g = jax.nn.sigmoid(gates[:, 0 * H:1 * H])
            f_g = jax.nn.sigmoid(gates[:, 1 * H:2 * H])
            g_g = jnp.tanh(gates[:, 2 * H:3 * H])
            o_g = jax.nn.sigmoid(gates[:, 3 * H:4 * H])
            c_new = f_g * c + i_g * g_g
            h_new = o_g * jnp.tanh(c_new)
            # pack_padded_sequence semantics: stop updating once t >= length[b]
            valid = lens > t
            return (jnp.where(valid, h_new, h), jnp.where(valid, c_new, c))

        # Bounded unroll keeps vreg/instruction pressure flat as Tc grows.
        h_fin, c_fin = lax.fori_loop(0, Tc, step, (h_scr[...], c_scr[...]),
                                     unroll=8)
        h_scr[...] = h_fin
        c_scr[...] = c_fin

    @pl.when(tc == pl.num_programs(1) - 1)
    def _():
        # Classifier head on hidden_out[-1] (assumed single Linear).
        logits = (jnp.dot(h_scr[...].astype(jnp.bfloat16), w_fc_ref[...],
                          preferred_element_type=jnp.float32) + b_fc_ref[...])
        out_ref[...] = logits


# ---------------------------------------------------------------------------
# Tile-size helpers
# ---------------------------------------------------------------------------
def _pick_tile(dim, cap, align):
    """Largest multiple of `align` that divides `dim` and is <= cap; else the full dim."""
    if dim <= cap:
        return dim
    t = (min(cap, dim) // align) * align
    while t >= align:
        if dim % t == 0:
            return t
        t -= align
    return dim


def _pick_divisor(dim, cap):
    """Largest t <= cap that divides dim."""
    t = min(dim, cap)
    while dim % t:
        t -= 1
    return t


# ---------------------------------------------------------------------------
# Wrapper
# ---------------------------------------------------------------------------
def rnn_forward(frames, length, params, *, t_chunk=32):
    """frames: (T, B, F) float32; length: (B,) int, sorted descending. Returns (B, C)."""
    T, B, F = frames.shape
    H = params["w_hh"].shape[0]
    G = 4 * H
    C = params["w_fc"].shape[1]
    Cpad = ((C + 127) // 128) * 128      # lane-dense classifier output

    # bf16 matmul inputs, f32 gate math / cell state.
    x2d = frames.astype(jnp.bfloat16).reshape(T * B, F)
    w_ih = params["w_ih"].astype(jnp.bfloat16)
    w_hh = params["w_hh"].astype(jnp.bfloat16)
    b = params["b"].astype(jnp.float32)
    w_fc = jnp.zeros((H, Cpad), jnp.bfloat16).at[:, :C].set(
        params["w_fc"].astype(jnp.bfloat16))
    b_fc = jnp.zeros((1, Cpad), jnp.float32).at[:, :C].set(
        params["b_fc"].astype(jnp.float32))

    # ------------- phase 1: hoisted input projection (one big GEMM) -------------
    M = T * B
    tm = _pick_tile(M, 512, 8)           # big tiles: fill the 256x256 MXU (v6e/v7x),
    tn = _pick_tile(G, 512, 128)         # fewer passes over W_ih / x in HBM
    tk = _pick_tile(F, 512, 128)
    assert M % tm == 0 and G % tn == 0 and F % tk == 0

    gates_x = pl.pallas_call(
        _proj_kernel,
        out_shape=jax.ShapeDtypeStruct((M, G), jnp.bfloat16),   # bf16 intermediate
        grid_spec=pltpu.PrefetchScalarGridSpec(
            num_scalar_prefetch=0,
            grid=(M // tm, G // tn, F // tk),
            in_specs=[pl.BlockSpec((tm, tk), lambda i, j, k: (i, k)),
                      pl.BlockSpec((tk, tn), lambda i, j, k: (k, j)),
                      pl.BlockSpec((1, tn), lambda i, j, k: (0, j))],
            out_specs=pl.BlockSpec((tm, tn), lambda i, j, k: (i, j)),
            scratch_shapes=[pltpu.VMEM((tm, tn), jnp.float32)]),
        compiler_params=pltpu.CompilerParams(
            dimension_semantics=("parallel", "parallel", "arbitrary")),
    )(x2d, w_ih, b)
    gates_x = gates_x.reshape(T, B, G)

    # ------------- phase 2: recurrence streamed over time chunks -------------
    Tc = _pick_divisor(T, t_chunk)
    assert T % Tc == 0
    # bb = B keeps the h@W_hh matmul row-bound (not MXU-weight-load bound).  On v7x,
    # split to bb = B // 2 (grid dim 0 of size 2, "parallel") only when B // 2 >= ~128.
    bb = B
    lengths_i32 = length.astype(jnp.int32)
    len2d = lengths_i32.reshape(B, 1)

    def gx_index_map(bi, t, len_ref):
        # DMA skip: for chunks past this block's max length, return the last-valid
        # block index so Pallas reuses the resident block and issues no new copy.
        # (Compute for those chunks is skipped inside the kernel via pl.when.)
        block_max = len_ref[bi * bb]
        last_valid = jnp.maximum((block_max + Tc - 1) // Tc - 1, 0)
        return (jnp.minimum(t, last_valid), bi, 0)

    # VMEM budget computed from actual need (double-buffered pipeline copies) + margin.
    db = 2
    vmem_need = (db * Tc * bb * G * 2 +          # gates_x chunk (bf16)
                 db * H * G * 2 +                # W_hh (bf16)
                 db * max(bb, 8) * 128 * 4 +     # lengths block (layout-padded)
                 db * H * Cpad * 2 +             # W_fc (bf16)
                 db * 8 * Cpad * 4 +             # b_fc (layout-padded)
                 db * bb * Cpad * 4 +            # output block
                 2 * bb * H * 4)                 # h/c scratch
    vmem_limit = int(max(vmem_need + (8 << 20), 16 << 20))
    # NOTE: w_hh / w_fc / b_fc are resident (constant index_map); on VMEM-tight parts
    # (v7x, 64 MiB) they could additionally be single-buffered via
    # pipeline_mode=pl.Buffered(1) to reclaim their second pipeline buffer.

    logits_pad = pl.pallas_call(
        _recurrence_kernel,
        out_shape=jax.ShapeDtypeStruct((B, Cpad), jnp.float32),
        grid_spec=pltpu.PrefetchScalarGridSpec(
            num_scalar_prefetch=1,       # lengths -> SMEM, also fed to index_maps
            grid=(B // bb, T // Tc),
            in_specs=[pl.BlockSpec((Tc, bb, G), gx_index_map),
                      pl.BlockSpec((H, G),      lambda bi, t, lens: (0, 0)),
                      pl.BlockSpec((bb, 1),     lambda bi, t, lens: (bi, 0)),
                      pl.BlockSpec((H, Cpad),   lambda bi, t, lens: (0, 0)),
                      pl.BlockSpec((1, Cpad),   lambda bi, t, lens: (0, 0))],
            out_specs=pl.BlockSpec((bb, Cpad),  lambda bi, t, lens: (bi, 0)),
            scratch_shapes=[pltpu.VMEM((bb, H), jnp.float32),
                            pltpu.VMEM((bb, H), jnp.float32)]),
        compiler_params=pltpu.CompilerParams(
            dimension_semantics=("parallel", "arbitrary"),
            vmem_limit_bytes=vmem_limit),
    )(lengths_i32, gates_x, w_hh, len2d, w_fc, b_fc)

    return logits_pad[:, :C]


# ---------------------------------------------------------------------------
# Pure-JAX reference (matches the kernel's bf16-input / f32-accum matmuls and
# the bf16 gates_x intermediate)
# ---------------------------------------------------------------------------
def rnn_reference(frames, length, params):
    bf = lambda a: a.astype(jnp.bfloat16).astype(jnp.float32)
    T, B, F = frames.shape
    H = params["w_hh"].shape[0]
    gx = bf(frames).reshape(T * B, F) @ bf(params["w_ih"]) + params["b"]
    gx = bf(gx).reshape(T, B, 4 * H)          # bf16 intermediate, like the kernel
    h = jnp.zeros((B, H), jnp.float32)
    c = jnp.zeros((B, H), jnp.float32)
    len2d = length.reshape(B, 1)
    for t in range(T):
        gates = gx[t] + bf(h) @ bf(params["w_hh"])
        i_g = jax.nn.sigmoid(gates[:, 0 * H:1 * H])
        f_g = jax.nn.sigmoid(gates[:, 1 * H:2 * H])
        g_g = jnp.tanh(gates[:, 2 * H:3 * H])
        o_g = jax.nn.sigmoid(gates[:, 3 * H:4 * H])
        c_new = f_g * c + i_g * g_g
        h_new = o_g * jnp.tanh(c_new)
        valid = len2d > t
        h = jnp.where(valid, h_new, h)
        c = jnp.where(valid, c_new, c)
    return bf(h) @ bf(params["w_fc"]) + params["b_fc"]


def init_params(key, input_size, hidden_size, num_classes):
    """Synthetic parameters (PyTorch LSTM init is uniform(-1/sqrt(H), 1/sqrt(H)))."""
    k = jax.random.split(key, 6)
    bound = 1.0 / jnp.sqrt(jnp.float32(hidden_size))
    u = lambda kk, shape: jax.random.uniform(kk, shape, jnp.float32, -bound, bound)
    return {
        "w_ih": u(k[0], (input_size, 4 * hidden_size)),
        "w_hh": u(k[1], (hidden_size, 4 * hidden_size)),
        "b":    u(k[2], (1, 4 * hidden_size)) + u(k[3], (1, 4 * hidden_size)),  # b_ih + b_hh
        "w_fc": u(k[4], (hidden_size, num_classes)),
        "b_fc": u(k[5], (1, num_classes)),
    }


if __name__ == "__main__":
    # Scaled-down shapes consistent with the module (real: F=2048, H=512, seq_len x B x F).
    T, B, F, H, C = 16, 8, 512, 128, 16

    key = jax.random.PRNGKey(0)
    k_x, k_p = jax.random.split(key)
    frames = jax.random.normal(k_x, (T, B, F), jnp.float32)
    # pack_padded_sequence(enforce_sorted=True) expects descending lengths.
    length = jnp.array([16, 16, 14, 12, 9, 7, 4, 2], dtype=jnp.int32)

    params = init_params(k_p, F, H, C)

    out = rnn_forward(frames, length, params)
    jax.block_until_ready(out)
    assert out.shape == (B, C) and out.dtype == jnp.float32

    ref = rnn_reference(frames, length, params)
    assert jnp.allclose(out, ref, atol=2e-2, rtol=2e-2), float(jnp.max(jnp.abs(out - ref)))

    # TODO(synk): the original `Classfier(..., mode='rnn')` / `Encoder` definitions are not
    # given; a single-layer LSTM and a single Linear head are assumed (extra
    # activations/dropout, if any, are not reproduced).
    print("KERNEL_OK")
</pallas_src>

<mosaic_0001>
module attributes {stable_mosaic.version = 11 : i64} {
  func.func @_proj_kernel(%arg0: i32, %arg1: i32, %arg2: i32, %arg3: memref<128x512xbf16, #tpu.memory_space<vmem>>, %arg4: memref<512x512xbf16, #tpu.memory_space<vmem>>, %arg5: memref<1x512xf32, #tpu.memory_space<vmem>>, %arg6: memref<128x512xbf16, #tpu.memory_space<vmem>>, %arg7: memref<128x512xf32, #tpu.memory_space<vmem>>) attributes {dimension_semantics = [#tpu.dimension_semantics<parallel>, #tpu.dimension_semantics<parallel>, #tpu.dimension_semantics<arbitrary>], iteration_bounds = array<i64: 1, 1, 1>, scalar_prefetch = 0 : i64, scratch_operands = 1 : i64, tpu.core_type = #tpu.core_type<tc>, window_params = [{transform_indices = @transform_0, window_bounds = array<i64: 128, 512>}, {transform_indices = @transform_1, window_bounds = array<i64: 512, 512>}, {transform_indices = @transform_2, window_bounds = array<i64: 1, 512>}, {transform_indices = @transform_3, window_bounds = array<i64: 128, 512>}]} {
    %c0_i32 = arith.constant 0 : i32
    %0 = arith.cmpi eq, %arg2, %c0_i32 : i32
    %1 = arith.extui %0 : i1 to i32
    %c0_i32_0 = arith.constant 0 : i32
    %2 = arith.cmpi ne, %1, %c0_i32_0 : i32
    scf.if %2 {
      %cst_10 = arith.constant 0.000000e+00 : f32
      %12 = vector.broadcast %cst_10 : f32 to vector<128x512xf32>
      %c0_11 = arith.constant 0 : index
      %c0_12 = arith.constant 0 : index
      %13 = vector.load %arg7[%c0_11, %c0_12] : memref<128x512xf32, #tpu.memory_space<vmem>>, vector<128x512xf32>
      tpu.vector_store %arg7[%c0_11, %c0_12], %12 {strides = array<i32>} : memref<128x512xf32, #tpu.memory_space<vmem>>, vector<128x512xf32>,
    } else {
    }
    %c0 = arith.constant 0 : index
    %c0_1 = arith.constant 0 : index
    %3 = vector.load %arg7[%c0, %c0_1] : memref<128x512xf32, #tpu.memory_space<vmem>>, vector<128x512xf32>
    %c0_2 = arith.constant 0 : index
    %c0_3 = arith.constant 0 : index
    %4 = vector.load %arg3[%c0_2, %c0_3] : memref<128x512xbf16, #tpu.memory_space<vmem>>, vector<128x512xbf16>
    %c0_4 = arith.constant 0 : index
    %c0_5 = arith.constant 0 : index
    %5 = vector.load %arg4[%c0_4, %c0_5] : memref<512x512xbf16, #tpu.memory_space<vmem>>, vector<512x512xbf16>
    %cst = arith.constant dense<0.000000e+00> : vector<128x512xf32>
    %6 = tpu.matmul %4, %5, %cst {dimension_numbers = #tpu.dot_dimension_numbers<[1], [0], [0], [1], [0, 0, 1, 1], [], []>} : vector<128x512xbf16>, vector<512x512xbf16>, vector<128x512xf32> -> vector<128x512xf32>
    %7 = arith.addf %3, %6 : vector<128x512xf32>
    %c0_6 = arith.constant 0 : index
    %c0_7 = arith.constant 0 : index
    %8 = vector.load %arg7[%c0_6, %c0_7] : memref<128x512xf32, #tpu.memory_space<vmem>>, vector<128x512xf32>
    tpu.vector_store %arg7[%c0_6, %c0_7], %7 {strides = array<i32>} : memref<128x512xf32, #tpu.memory_space<vmem>>, vector<128x512xf32>,
    %c0_i32_8 = arith.constant 0 : i32
    %9 = arith.cmpi eq, %arg2, %c0_i32_8 : i32
    %10 = arith.extui %9 : i1 to i32
    %c0_i32_9 = arith.constant 0 : i32
    %11 = arith.cmpi ne, %10, %c0_i32_9 : i32
    scf.if %11 {
      %c0_10 = arith.constant 0 : index
      %c0_11 = arith.constant 0 : index
      %12 = vector.load %arg7[%c0_10, %c0_11] : memref<128x512xf32, #tpu.memory_space<vmem>>, vector<128x512xf32>
      %c0_12 = arith.constant 0 : index
      %c0_13 = arith.constant 0 : index
      %13 = vector.load %arg5[%c0_12, %c0_13] : memref<1x512xf32, #tpu.memory_space<vmem>>, vector<1x512xf32>
      %14 = vector.broadcast %13 : vector<1x512xf32> to vector<128x512xf32>
      %15 = arith.addf %12, %14 : vector<128x512xf32>
      %16 = arith.truncf %15 : vector<128x512xf32> to vector<128x512xbf16>
      %c0_14 = arith.constant 0 : index
      %c0_15 = arith.constant 0 : index
      %17 = vector.load %arg6[%c0_14, %c0_15] : memref<128x512xbf16, #tpu.memory_space<vmem>>, vector<128x512xbf16>
      tpu.vector_store %arg6[%c0_14, %c0_15], %16 {strides = array<i32>} : memref<128x512xbf16, #tpu.memory_space<vmem>>, vector<128x512xbf16>,
    } else {
    }
    return
  }
  func.func @transform_0(%arg0: i32, %arg1: i32, %arg2: i32) -> (i32, i32) {
    %c0_i32 = arith.constant 0 : i32
    return %arg0, %arg2 : i32, i32
  }
  func.func @transform_1(%arg0: i32, %arg1: i32, %arg2: i32) -> (i32, i32) {
    %c0_i32 = arith.constant 0 : i32
    return %arg2, %arg1 : i32, i32
  }
  func.func @transform_2(%arg0: i32, %arg1: i32, %arg2: i32) -> (i32, i32) {
    %c0_i32 = arith.constant 0 : i32
    %c0_i32_0 = arith.constant 0 : i32
    return %c0_i32, %arg1 : i32, i32
  }
  func.func @transform_3(%arg0: i32, %arg1: i32, %arg2: i32) -> (i32, i32) {
    %c0_i32 = arith.constant 0 : i32
    return %arg0, %arg1 : i32, i32
  }
}

</mosaic_0001>

<llo_original>
// kernel: tpu_custom_call.1
$region0: #{tpu_custom_call.1}
  #allocation0 [shape = 'u32[]', space=smem, size = 0x4, offset = 0x4, fixed_abs, tag = 'smem constant byte address 0x4 - core index']
  #allocation1 [shape = 'u32[144,128]{1,0:T(1,128)}', space=vmem, size = 0x12000, scoped, tag = 'internal scratch']
  #allocation2 [shape = 'f32[128,512]{1,0:T(8,128)}', space=vmem, size = 0x40000, scoped, tag = 'scratch operand']
  %s0 = inlined_call_operand.hbm [shape: bf16[128,512], index: 0, kind: input, shape index: {}]
  %s1 = inlined_call_operand.hbm [shape: bf16[512,512], index: 1, kind: input, shape index: {}]
  %s2 = inlined_call_operand.vmem [shape: f32[1,512], index: 2, kind: input, shape index: {}]
  %s3 = inlined_call_operand.hbm [shape: bf16[128,512], index: 3, kind: output, shape index: {}]
  %s4 = sld [smem:[#allocation0]]
  $region38: #{tpu_custom_call.1} parent=0
    _
  %s6 = ssub.s32 1, %s4
  %s7 = scalar_select 0, %s6, %s4
  $region1: #{tpu_custom_call.1} parent=0
    #allocation3 [shape = 'u8[131072]{0}', space=vmem, size = 0x20000, scoped, tag = 'input window, operand 0, single buffered']
    #allocation4 [shape = 's32[1]{0}', space=sflag, size = 0x4, scoped, tag = 'scoped memory for tpu_custom_call.1']
    #allocation5 [shape = 's32[1]{0}', space=sflag, size = 0x4, scoped, tag = 'scoped memory for tpu_custom_call.1']
    #allocation6 [shape = 'u8[524288]{0}', space=vmem, size = 0x80000, scoped, tag = 'input window, operand 1, single buffered']
    #allocation7 [shape = 's32[1]{0}', space=sflag, size = 0x4, scoped, tag = 'scoped memory for tpu_custom_call.1']
    #allocation8 [shape = 'u8[131072]{0}', space=vmem, size = 0x20000, scoped, tag = 'output window, operand 0, single buffered']
    %8 = vsyncpa [#allocation4], 0
    %9 = vsyncpa [#allocation7], 0
    %10 = vsyncpa [#allocation5], 0
    // Predicated region
    $region2: #{tpu_custom_call.1} parent=1 // pred_check
      _
    $region3: #{tpu_custom_call.1} parent=1 // pred_check_branch
      %12 = sbr.rel (0) target = $region5
    $region4: #{tpu_custom_call.1} parent=1 // pred_region
      %s14 = ssub.s32 4096, 4096
      %15 = vsyncadd [#allocation4], %s14
      %s16 = sshll.u32 [#allocation3], 4
      %s17 = int_to_ptr.vmem [resolvable:$true] %s16
      %22 = dma.hbm_to_vmem [thread:$0]  %s0, 4096, %s17, [#allocation4], 256, 256, 16
    $region5: #{tpu_custom_call.1} parent=1 // pred_fallthru
      _
    // Predicated region
    $region6: #{tpu_custom_call.1} parent=1 // pred_check
      _
    $region7: #{tpu_custom_call.1} parent=1 // pred_check_branch
      %24 = sbr.rel (0) target = $region9
    $region8: #{tpu_custom_call.1} parent=1 // pred_region
      %s26 = ssub.s32 16384, 16384
      %27 = vsyncadd [#allocation7], %s26
      %s28 = sshll.u32 [#allocation6], 4
      %s29 = int_to_ptr.vmem [resolvable:$true] %s28
      %34 = dma.hbm_to_vmem [thread:$0]  %s1, 16384, %s29, [#allocation7], 256, 256, 16
    $region9: #{tpu_custom_call.1} parent=1 // pred_fallthru
      _
    // Predicated region
    $region10: #{tpu_custom_call.1} parent=1 // pred_check
      _
    $region11: #{tpu_custom_call.1} parent=1 // pred_check_branch
      %36 = sbr.rel (0) target = $region13
    $region12: #{tpu_custom_call.1} parent=1 // pred_region
      _
    $region13: #{tpu_custom_call.1} parent=1 // pred_fallthru
      _
    // Predicated region
    $region14: #{tpu_custom_call.1} parent=1 // pred_check
      _
    $region15: #{tpu_custom_call.1} parent=1 // pred_check_branch
      %38 = sbr.rel (0) target = $region17
    $region16: #{tpu_custom_call.1} parent=1 // pred_region
      %39 = dma.done [#allocation4], 4096
    $region17: #{tpu_custom_call.1} parent=1 // pred_fallthru
      _
    // Predicated region
    $region18: #{tpu_custom_call.1} parent=1 // pred_check
      _
    $region19: #{tpu_custom_call.1} parent=1 // pred_check_branch
      %41 = sbr.rel (0) target = $region21
    $region20: #{tpu_custom_call.1} parent=1 // pred_region
      %42 = dma.done [#allocation7], 16384
    $region21: #{tpu_custom_call.1} parent=1 // pred_fallthru
      _
    %p43 = scmp.eq.s32.totalorder 0, 0
    // Predicated region
    $region22: #{tpu_custom_call.1} parent=1 // pred_check
      %p44 = pneg %p43
    $region23: #{tpu_custom_call.1} parent=1 // pred_check_branch
      %46 = sbr.rel (%p44) target = $region25
    $region24: #{tpu_custom_call.1} parent=1 // pred_region
      %47 = vst [vmem:[#allocation2] sm:$0xff] 0.0
      %48 = vst [vmem:[#allocation2 + $0x8] sm:$0xff] 0.0
      %49 = vst [vmem:[#allocation2 + $0x10] sm:$0xff] 0.0
      %50 = vst [vmem:[#allocation2 + $0x18] sm:$0xff] 0.0
      %51 = vst [vmem:[#allocation2 + $0x20] sm:$0xff] 0.0
      %52 = vst [vmem:[#allocation2 + $0x28] sm:$0xff] 0.0
      %53 = vst [vmem:[#allocation2 + $0x30] sm:$0xff] 0.0
      %54 = vst [vmem:[#allocation2 + $0x38] sm:$0xff] 0.0
      %55 = vst [vmem:[#allocation2 + $0x40] sm:$0xff] 0.0
      %56 = vst [vmem:[#allocation2 + $0x48] sm:$0xff] 0.0
      %57 = vst [vmem:[#allocation2 + $0x50] sm:$0xff] 0.0
      %58 = vst [vmem:[#allocation2 + $0x58] sm:$0xff] 0.0
      %59 = vst [vmem:[#allocation2 + $0x60] sm:$0xff] 0.0
      %60 = vst [vmem:[#allocation2 + $0x68] sm:$0xff] 0.0
      %61 = vst [vmem:[#allocation2 + $0x70] sm:$0xff] 0.0
      %62 = vst [vmem:[#allocation2 + $0x78] sm:$0xff] 0.0
      %63 = vst [vmem:[#allocation2 + $0x80] sm:$0xff] 0.0
      %64 = vst [vmem:[#allocation2 + $0x88] sm:$0xff] 0.0
      %65 = vst [vmem:[#allocation2 + $0x90] sm:$0xff] 0.0
      %66 = vst [vmem:[#allocation2 + $0x98] sm:$0xff] 0.0
      %67 = vst [vmem:[#allocation2 + $0xa0] sm:$0xff] 0.0
      %68 = vst [vmem:[#allocation2 + $0xa8] sm:$0xff] 0.0
      %69 = vst [vmem:[#allocation2 + $0xb0] sm:$0xff] 0.0
      %70 = vst [vmem:[#allocation2 + $0xb8] sm:$0xff] 0.0
      %71 = vst [vmem:[#allocation2 + $0xc0] sm:$0xff] 0.0
      %72 = vst [vmem:[#allocation2 + $0xc8] sm:$0xff] 0.0
      %73 = vst [vmem:[#allocation2 + $0xd0] sm:$0xff] 0.0
      %74 = vst [vmem:[#allocation2 + $0xd8] sm:$0xff] 0.0
      %75 = vst [vmem:[#allocation2 + $0xe0] sm:$0xff] 0.0
      %76 = vst [vmem:[#allocation2 + $0xe8] sm:$0xff] 0.0
      %77 = vst [vmem:[#allocation2 + $0xf0] sm:$0xff] 0.0
      %78 = vst [vmem:[#allocation2 + $0xf8] sm:$0xff] 0.0
      %79 = vst [vmem:[#allocation2 + $0x100] sm:$0xff] 0.0
      %80 = vst [vmem:[#allocation2 + $0x108] sm:$0xff] 0.0
      %81 = vst [vmem:[#allocation2 + $0x110] sm:$0xff] 0.0
      %82 = vst [vmem:[#allocation2 + $0x118] sm:$0xff] 0.0
      %83 = vst [vmem:[#allocation2 + $0x120] sm:$0xff] 0.0
      %84 = vst [vmem:[#allocation2 + $0x128] sm:$0xff] 0.0
      %85 = vst [vmem:[#allocation2 + $0x130] sm:$0xff] 0.0
      %86 = vst [vmem:[#allocation2 + $0x138] sm:$0xff] 0.0
      %87 = vst [vmem:[#allocation2 + $0x140] sm:$0xff] 0.0
      %88 = vst [vmem:[#allocation2 + $0x148] sm:$0xff] 0.0
      %89 = vst [vmem:[#allocation2 + $0x150] sm:$0xff] 0.0
      %90 = vst [vmem:[#allocation2 + $0x158] sm:$0xff] 0.0
      %91 = vst [vmem:[#allocation2 + $0x160] sm:$0xff] 0.0
      %92 = vst [vmem:[#allocation2 + $0x168] sm:$0xff] 0.0
      %93 = vst [vmem:[#allocation2 + $0x170] sm:$0xff] 0.0
      %94 = vst [vmem:[#allocation2 + $0x178] sm:$0xff] 0.0
      %95 = vst [vmem:[#allocation2 + $0x180] sm:$0xff] 0.0
      %96 = vst [vmem:[#allocation2 + $0x188] sm:$0xff] 0.0
      %97 = vst [vmem:[#allocation2 + $0x190] sm:$0xff] 0.0
      %98 = vst [vmem:[#allocation2 + $0x198] sm:$0xff] 0.0
      %99 = vst [vmem:[#allocation2 + $0x1a0] sm:$0xff] 0.0
      %100 = vst [vmem:[#allocation2 + $0x1a8] sm:$0xff] 0.0
      %101 = vst [vmem:[#allocation2 + $0x1b0] sm:$0xff] 0.0
      %102 = vst [vmem:[#allocation2 + $0x1b8] sm:$0xff] 0.0
      %103 = vst [vmem:[#allocation2 + $0x1c0] sm:$0xff] 0.0
      %104 = vst [vmem:[#allocation2 + $0x1c8] sm:$0xff] 0.0
      %105 = vst [vmem:[#allocation2 + $0x1d0] sm:$0xff] 0.0
      %106 = vst [vmem:[#allocation2 + $0x1d8] sm:$0xff] 0.0
      %107 = vst [vmem:[#allocation2 + $0x1e0] sm:$0xff] 0.0
      %108 = vst [vmem:[#allocation2 + $0x1e8] sm:$0xff] 0.0
      %109 = vst [vmem:[#allocation2 + $0x1f0] sm:$0xff] 0.0
      %110 = vst [vmem:[#allocation2 + $0x1f8] sm:$0xff] 0.0
    $region25: #{tpu_custom_call.1} parent=1 // pred_fallthru
      _
    %v111 = vld [vmem:[#allocation2] sm:$0xff]
    %v112 = vld [vmem:[#allocation2 + $0x8] sm:$0xff]
    %v113 = vld [vmem:[#allocation2 + $0x10] sm:$0xff]
    %v114 = vld [vmem:[#allocation2 + $0x18] sm:$0xff]
    %v115 = vld [vmem:[#allocation2 + $0x20] sm:$0xff]
    %v116 = vld [vmem:[#allocation2 + $0x28] sm:$0xff]
    %v117 = vld [vmem:[#allocation2 + $0x30] sm:$0xff]
    %v118 = vld [vmem:[#allocation2 + $0x38] sm:$0xff]
    %v119 = vld [vmem:[#allocation2 + $0x40] sm:$0xff]
    %v120 = vld [vmem:[#allocation2 + $0x48] sm:$0xff]
    %v121 = vld [vmem:[#allocation2 + $0x50] sm:$0xff]
    %v122 = vld [vmem:[#allocation2 + $0x58] sm:$0xff]
    %v123 = vld [vmem:[#allocation2 + $0x60] sm:$0xff]
    %v124 = vld [vmem:[#allocation2 + $0x68] sm:$0xff]
    %v125 = vld [vmem:[#allocation2 + $0x70] sm:$0xff]
    %v126 = vld [vmem:[#allocation2 + $0x78] sm:$0xff]
    %v127 = vld [vmem:[#allocation2 + $0x80] sm:$0xff]
    %v128 = vld [vmem:[#allocation2 + $0x88] sm:$0xff]
    %v129 = vld [vmem:[#allocation2 + $0x90] sm:$0xff]
    %v130 = vld [vmem:[#allocation2 + $0x98] sm:$0xff]
    %v131 = vld [vmem:[#allocation2 + $0xa0] sm:$0xff]
    %v132 = vld [vmem:[#allocation2 + $0xa8] sm:$0xff]
    %v133 = vld [vmem:[#allocation2 + $0xb0] sm:$0xff]
    %v134 = vld [vmem:[#allocation2 + $0xb8] sm:$0xff]
    %v135 = vld [vmem:[#allocation2 + $0xc0] sm:$0xff]
    %v136 = vld [vmem:[#allocation2 + $0xc8] sm:$0xff]
    %v137 = vld [vmem:[#allocation2 + $0xd0] sm:$0xff]
    %v138 = vld [vmem:[#allocation2 + $0xd8] sm:$0xff]
    %v139 = vld [vmem:[#allocation2 + $0xe0] sm:$0xff]
    %v140 = vld [vmem:[#allocation2 + $0xe8] sm:$0xff]
    %v141 = vld [vmem:[#allocation2 + $0xf0] sm:$0xff]
    %v142 = vld [vmem:[#allocation2 + $0xf8] sm:$0xff]
    %v143 = vld [vmem:[#allocation2 + $0x100] sm:$0xff]
    %v144 = vld [vmem:[#allocation2 + $0x108] sm:$0xff]
    %v145 = vld [vmem:[#allocation2 + $0x110] sm:$0xff]
    %v146 = vld [vmem:[#allocation2 + $0x118] sm:$0xff]
    %v147 = vld [vmem:[#allocation2 + $0x120] sm:$0xff]
    %v148 = vld [vmem:[#allocation2 + $0x128] sm:$0xff]
    %v149 = vld [vmem:[#allocation2 + $0x130] sm:$0xff]
    %v150 = vld [vmem:[#allocation2 + $0x138] sm:$0xff]
    %v151 = vld [vmem:[#allocation2 + $0x140] sm:$0xff]
    %v152 = vld [vmem:[#allocation2 + $0x148] sm:$0xff]
    %v153 = vld [vmem:[#allocation2 + $0x150] sm:$0xff]
    %v154 = vld [vmem:[#allocation2 + $0x158] sm:$0xff]
    %v155 = vld [vmem:[#allocation2 + $0x160] sm:$0xff]
    %v156 = vld [vmem:[#allocation2 + $0x168] sm:$0xff]
    %v157 = vld [vmem:[#allocation2 + $0x170] sm:$0xff]
    %v158 = vld [vmem:[#allocation2 + $0x178] sm:$0xff]
    %v159 = vld [vmem:[#allocation2 + $0x180] sm:$0xff]
    %v160 = vld [vmem:[#allocation2 + $0x188] sm:$0xff]
    %v161 = vld [vmem:[#allocation2 + $0x190] sm:$0xff]
    %v162 = vld [vmem:[#allocation2 + $0x198] sm:$0xff]
    %v163 = vld [vmem:[#allocation2 + $0x1a0] sm:$0xff]
    %v164 = vld [vmem:[#allocation2 + $0x1a8] sm:$0xff]
    %v165 = vld [vmem:[#allocation2 + $0x1b0] sm:$0xff]
    %v166 = vld [vmem:[#allocation2 + $0x1b8] sm:$0xff]
    %v167 = vld [vmem:[#allocation2 + $0x1c0] sm:$0xff]
    %v168 = vld [vmem:[#allocation2 + $0x1c8] sm:$0xff]
    %v169 = vld [vmem:[#allocation2 + $0x1d0] sm:$0xff]
    %v170 = vld [vmem:[#allocation2 + $0x1d8] sm:$0xff]
    %v171 = vld [vmem:[#allocation2 + $0x1e0] sm:$0xff]
    %v172 = vld [vmem:[#allocation2 + $0x1e8] sm:$0xff]
    %v173 = vld [vmem:[#allocation2 + $0x1f0] sm:$0xff]
    %v174 = vld [vmem:[#allocation2 + $0x1f8] sm:$0xff]
    %v175 = vld [vmem:[#allocation3] sm:$0xff]
    %v176 = vld [vmem:[#allocation3 + $0x8] sm:$0xff]
    %v177 = vld [vmem:[#allocation3 + $0x10] sm:$0xff]
    %v178 = vld [vmem:[#allocation3 + $0x18] sm:$0xff]
    %v179 = vld [vmem:[#allocation3 + $0x20] sm:$0xff]
    %v180 = vld [vmem:[#allocation3 + $0x28] sm:$0xff]
    %v181 = vld [vmem:[#allocation3 + $0x30] sm:$0xff]
    %v182 = vld [vmem:[#allocation3 + $0x38] sm:$0xff]
    %v183 = vld [vmem:[#allocation3 + $0x40] sm:$0xff]
    %v184 = vld [vmem:[#allocation3 + $0x48] sm:$0xff]
    %v185 = vld [vmem:[#allocation3 + $0x50] sm:$0xff]
    %v186 = vld [vmem:[#allocation3 + $0x58] sm:$0xff]
    %v187 = vld [vmem:[#allocation3 + $0x60] sm:$0xff]
    %v188 = vld [vmem:[#allocation3 + $0x68] sm:$0xff]
    %v189 = vld [vmem:[#allocation3 + $0x70] sm:$0xff]
    %v190 = vld [vmem:[#allocation3 + $0x78] sm:$0xff]
    %v191 = vld [vmem:[#allocation3 + $0x80] sm:$0xff]
    %v192 = vld [vmem:[#allocation3 + $0x88] sm:$0xff]
    %v193 = vld [vmem:[#allocation3 + $0x90] sm:$0xff]
    %v194 = vld [vmem:[#allocation3 + $0x98] sm:$0xff]
    %v195 = vld [vmem:[#allocation3 + $0xa0] sm:$0xff]
    %v196 = vld [vmem:[#allocation3 + $0xa8] sm:$0xff]
    %v197 = vld [vmem:[#allocation3 + $0xb0] sm:$0xff]
    %v198 = vld [vmem:[#allocation3 + $0xb8] sm:$0xff]
    %v199 = vld [vmem:[#allocation3 + $0xc0] sm:$0xff]
    %v200 = vld [vmem:[#allocation3 + $0xc8] sm:$0xff]
    %v201 = vld [vmem:[#allocation3 + $0xd0] sm:$0xff]
    %v202 = vld [vmem:[#allocation3 + $0xd8] sm:$0xff]
    %v203 = vld [vmem:[#allocation3 + $0xe0] sm:$0xff]
    %v204 = vld [vmem:[#allocation3 + $0xe8] sm:$0xff]
    %v205 = vld [vmem:[#allocation3 + $0xf0] sm:$0xff]
    %v206 = vld [vmem:[#allocation3 + $0xf8] sm:$0xff]
    %v207 = vld [vmem:[#allocation6] sm:$0xff]
    %v208 = vld [vmem:[#allocation6 + $0x8] sm:$0xff]
    %v209 = vld [vmem:[#allocation6 + $0x10] sm:$0xff]
    %v210 = vld [vmem:[#allocation6 + $0x18] sm:$0xff]
    %v211 = vld [vmem:[#allocation6 + $0x20] sm:$0xff]
    %v212 = vld [vmem:[#allocation6 + $0x28] sm:$0xff]
    %v213 = vld [vmem:[#allocation6 + $0x30] sm:$0xff]
    %v214 = vld [vmem:[#allocation6 + $0x38] sm:$0xff]
    %v215 = vld [vmem:[#allocation6 + $0x40] sm:$0xff]
    %v216 = vld [vmem:[#allocation6 + $0x48] sm:$0xff]
    %v217 = vld [vmem:[#allocation6 + $0x50] sm:$0xff]
    %v218 = vld [vmem:[#allocation6 + $0x58] sm:$0xff]
    %v219 = vld [vmem:[#allocation6 + $0x60] sm:$0xff]
    %v220 = vld [vmem:[#allocation6 + $0x68] sm:$0xff]
    %v221 = vld [vmem:[#allocation6 + $0x70] sm:$0xff]
    %v222 = vld [vmem:[#allocation6 + $0x78] sm:$0xff]
    %v223 = vld [vmem:[#allocation6 + $0x80] sm:$0xff]
    %v224 = vld [vmem:[#allocation6 + $0x88] sm:$0xff]
    %v225 = vld [vmem:[#allocation6 + $0x90] sm:$0xff]
    %v226 = vld [vmem:[#allocation6 + $0x98] sm:$0xff]
    %v227 = vld [vmem:[#allocation6 + $0xa0] sm:$0xff]
    %v228 = vld [vmem:[#allocation6 + $0xa8] sm:$0xff]
    %v229 = vld [vmem:[#allocation6 + $0xb0] sm:$0xff]
    %v230 = vld [vmem:[#allocation6 + $0xb8] sm:$0xff]
    %v231 = vld [vmem:[#allocation6 + $0xc0] sm:$0xff]
    %v232 = vld [vmem:[#allocation6 + $0xc8] sm:$0xff]
    %v233 = vld [vmem:[#allocation6 + $0xd0] sm:$0xff]
    %v234 = vld [vmem:[#allocation6 + $0xd8] sm:$0xff]
    %v235 = vld [vmem:[#allocation6 + $0xe0] sm:$0xff]
    %v236 = vld [vmem:[#allocation6 + $0xe8] sm:$0xff]
    %v237 = vld [vmem:[#allocation6 + $0xf0] sm:$0xff]
    %v238 = vld [vmem:[#allocation6 + $0xf8] sm:$0xff]
    %v239 = vld [vmem:[#allocation6 + $0x100] sm:$0xff]
    %v240 = vld [vmem:[#allocation6 + $0x108] sm:$0xff]
    %v241 = vld [vmem:[#allocation6 + $0x110] sm:$0xff]
    %v242 = vld [vmem:[#allocation6 + $0x118] sm:$0xff]
    %v243 = vld [vmem:[#allocation6 + $0x120] sm:$0xff]
    %v244 = vld [vmem:[#allocation6 + $0x128] sm:$0xff]
    %v245 = vld [vmem:[#allocation6 + $0x130] sm:$0xff]
    %v246 = vld [vmem:[#allocation6 + $0x138] sm:$0xff]
    %v247 = vld [vmem:[#allocation6 + $0x140] sm:$0xff]
    %v248 = vld [vmem:[#allocation6 + $0x148] sm:$0xff]
    %v249 = vld [vmem:[#allocation6 + $0x150] sm:$0xff]
    %v250 = vld [vmem:[#allocation6 + $0x158] sm:$0xff]
    %v251 = vld [vmem:[#allocation6 + $0x160] sm:$0xff]
    %v252 = vld [vmem:[#allocation6 + $0x168] sm:$0xff]
    %v253 = vld [vmem:[#allocation6 + $0x170] sm:$0xff]
    %v254 = vld [vmem:[#allocation6 + $0x178] sm:$0xff]
    %v255 = vld [vmem:[#allocation6 + $0x180] sm:$0xff]
    %v256 = vld [vmem:[#allocation6 + $0x188] sm:$0xff]
    %v257 = vld [vmem:[#allocation6 + $0x190] sm:$0xff]
    %v258 = vld [vmem:[#allocation6 + $0x198] sm:$0xff]
    %v259 = vld [vmem:[#allocation6 + $0x1a0] sm:$0xff]
    %v260 = vld [vmem:[#allocation6 + $0x1a8] sm:$0xff]
    %v261 = vld [vmem:[#allocation6 + $0x1b0] sm:$0xff]
    %v262 = vld [vmem:[#allocation6 + $0x1b8] sm:$0xff]
    %v263 = vld [vmem:[#allocation6 + $0x1c0] sm:$0xff]
    %v264 = vld [vmem:[#allocation6 + $0x1c8] sm:$0xff]
    %v265 = vld [vmem:[#allocation6 + $0x1d0] sm:$0xff]
    %v266 = vld [vmem:[#allocation6 + $0x1d8] sm:$0xff]
    %v267 = vld [vmem:[#allocation6 + $0x1e0] sm:$0xff]
    %v268 = vld [vmem:[#allocation6 + $0x1e8] sm:$0xff]
    %v269 = vld [vmem:[#allocation6 + $0x1f0] sm:$0xff]
    %v270 = vld [vmem:[#allocation6 + $0x1f8] sm:$0xff]
    %v271 = vld [vmem:[#allocation6 + $0x200] sm:$0xff]
    %v272 = vld [vmem:[#allocation6 + $0x208] sm:$0xff]
    %v273 = vld [vmem:[#allocation6 + $0x210] sm:$0xff]
    %v274 = vld [vmem:[#allocation6 + $0x218] sm:$0xff]
    %v275 = vld [vmem:[#allocation6 + $0x220] sm:$0xff]
    %v276 = vld [vmem:[#allocation6 + $0x228] sm:$0xff]
    %v277 = vld [vmem:[#allocation6 + $0x230] sm:$0xff]
    %v278 = vld [vmem:[#allocation6 + $0x238] sm:$0xff]
    %v279 = vld [vmem:[#allocation6 + $0x240] sm:$0xff]
    %v280 = vld [vmem:[#allocation6 + $0x248] sm:$0xff]
    %v281 = vld [vmem:[#allocation6 + $0x250] sm:$0xff]
    %v282 = vld [vmem:[#allocation6 + $0x258] sm:$0xff]
    %v283 = vld [vmem:[#allocation6 + $0x260] sm:$0xff]
    %v284 = vld [vmem:[#allocation6 + $0x268] sm:$0xff]
    %v285 = vld [vmem:[#allocation6 + $0x270] sm:$0xff]
    %v286 = vld [vmem:[#allocation6 + $0x278] sm:$0xff]
    %v287 = vld [vmem:[#allocation6 + $0x280] sm:$0xff]
    %v288 = vld [vmem:[#allocation6 + $0x288] sm:$0xff]
    %v289 = vld [vmem:[#allocation6 + $0x290] sm:$0xff]
    %v290 = vld [vmem:[#allocation6 + $0x298] sm:$0xff]
    %v291 = vld [vmem:[#allocation6 + $0x2a0] sm:$0xff]
    %v292 = vld [vmem:[#allocation6 + $0x2a8] sm:$0xff]
    %v293 = vld [vmem:[#allocation6 + $0x2b0] sm:$0xff]
    %v294 = vld [vmem:[#allocation6 + $0x2b8] sm:$0xff]
    %v295 = vld [vmem:[#allocation6 + $0x2c0] sm:$0xff]
    %v296 = vld [vmem:[#allocation6 + $0x2c8] sm:$0xff]
    %v297 = vld [vmem:[#allocation6 + $0x2d0] sm:$0xff]
    %v298 = vld [vmem:[#allocation6 + $0x2d8] sm:$0xff]
    %v299 = vld [vmem:[#allocation6 + $0x2e0] sm:$0xff]
    %v300 = vld [vmem:[#allocation6 + $0x2e8] sm:$0xff]
    %v301 = vld [vmem:[#allocation6 + $0x2f0] sm:$0xff]
    %v302 = vld [vmem:[#allocation6 + $0x2f8] sm:$0xff]
    %v303 = vld [vmem:[#allocation6 + $0x300] sm:$0xff]
    %v304 = vld [vmem:[#allocation6 + $0x308] sm:$0xff]
    %v305 = vld [vmem:[#allocation6 + $0x310] sm:$0xff]
    %v306 = vld [vmem:[#allocation6 + $0x318] sm:$0xff]
    %v307 = vld [vmem:[#allocation6 + $0x320] sm:$0xff]
    %v308 = vld [vmem:[#allocation6 + $0x328] sm:$0xff]
    %v309 = vld [vmem:[#allocation6 + $0x330] sm:$0xff]
    %v310 = vld [vmem:[#allocation6 + $0x338] sm:$0xff]
    %v311 = vld [vmem:[#allocation6 + $0x340] sm:$0xff]
    %v312 = vld [vmem:[#allocation6 + $0x348] sm:$0xff]
    %v313 = vld [vmem:[#allocation6 + $0x350] sm:$0xff]
    %v314 = vld [vmem:[#allocation6 + $0x358] sm:$0xff]
    %v315 = vld [vmem:[#allocation6 + $0x360] sm:$0xff]
    %v316 = vld [vmem:[#allocation6 + $0x368] sm:$0xff]
    %v317 = vld [vmem:[#allocation6 + $0x370] sm:$0xff]
    %v318 = vld [vmem:[#allocation6 + $0x378] sm:$0xff]
    %v319 = vld [vmem:[#allocation6 + $0x380] sm:$0xff]
    %v320 = vld [vmem:[#allocation6 + $0x388] sm:$0xff]
    %v321 = vld [vmem:[#allocation6 + $0x390] sm:$0xff]
    %v322 = vld [vmem:[#allocation6 + $0x398] sm:$0xff]
    %v323 = vld [vmem:[#allocation6 + $0x3a0] sm:$0xff]
    %v324 = vld [vmem:[#allocation6 + $0x3a8] sm:$0xff]
    %v325 = vld [vmem:[#allocation6 + $0x3b0] sm:$0xff]
    %v326 = vld [vmem:[#allocation6 + $0x3b8] sm:$0xff]
    %v327 = vld [vmem:[#allocation6 + $0x3c0] sm:$0xff]
    %v328 = vld [vmem:[#allocation6 + $0x3c8] sm:$0xff]
    %v329 = vld [vmem:[#allocation6 + $0x3d0] sm:$0xff]
    %v330 = vld [vmem:[#allocation6 + $0x3d8] sm:$0xff]
    %v331 = vld [vmem:[#allocation6 + $0x3e0] sm:$0xff]
    %v332 = vld [vmem:[#allocation6 + $0x3e8] sm:$0xff]
    %v333 = vld [vmem:[#allocation6 + $0x3f0] sm:$0xff]
    %v334 = vld [vmem:[#allocation6 + $0x3f8] sm:$0xff]
    %v367 = vunpack.c.l.b16 %v175
    %v368 = vunpack.c.h.b16 %v175
    %v369 = vunpack.c.l.b16 %v176
    %v370 = vunpack.c.h.b16 %v176
    %v371 = vunpack.c.l.b16 %v177
    %v372 = vunpack.c.h.b16 %v177
    %v373 = vunpack.c.l.b16 %v178
    %v374 = vunpack.c.h.b16 %v178
    %v375 = vunpack.c.l.b16 %v179
    %v376 = vunpack.c.h.b16 %v179
    %v377 = vunpack.c.l.b16 %v180
    %v378 = vunpack.c.h.b16 %v180
    %v379 = vunpack.c.l.b16 %v181
    %v380 = vunpack.c.h.b16 %v181
    %v381 = vunpack.c.l.b16 %v182
    %v382 = vunpack.c.h.b16 %v182
    %v383 = vunpack.c.l.b16 %v183
    %v384 = vunpack.c.h.b16 %v183
    %v385 = vunpack.c.l.b16 %v184
    %v386 = vunpack.c.h.b16 %v184
    %v387 = vunpack.c.l.b16 %v185
    %v388 = vunpack.c.h.b16 %v185
    %v389 = vunpack.c.l.b16 %v186
    %v390 = vunpack.c.h.b16 %v186
    %v391 = vunpack.c.l.b16 %v187
    %v392 = vunpack.c.h.b16 %v187
    %v393 = vunpack.c.l.b16 %v188
    %v394 = vunpack.c.h.b16 %v188
    %v395 = vunpack.c.l.b16 %v189
    %v396 = vunpack.c.h.b16 %v189
    %v397 = vunpack.c.l.b16 %v190
    %v398 = vunpack.c.h.b16 %v190
    %v399 = vunpack.c.l.b16 %v191
    %v400 = vunpack.c.h.b16 %v191
    %v401 = vunpack.c.l.b16 %v192
    %v402 = vunpack.c.h.b16 %v192
    %v403 = vunpack.c.l.b16 %v193
    %v404 = vunpack.c.h.b16 %v193
    %v405 = vunpack.c.l.b16 %v194
    %v406 = vunpack.c.h.b16 %v194
    %v407 = vunpack.c.l.b16 %v195
    %v408 = vunpack.c.h.b16 %v195
    %v409 = vunpack.c.l.b16 %v196
    %v410 = vunpack.c.h.b16 %v196
    %v411 = vunpack.c.l.b16 %v197
    %v412 = vunpack.c.h.b16 %v197
    %v413 = vunpack.c.l.b16 %v198
    %v414 = vunpack.c.h.b16 %v198
    %v415 = vunpack.c.l.b16 %v199
    %v416 = vunpack.c.h.b16 %v199
    %v417 = vunpack.c.l.b16 %v200
    %v418 = vunpack.c.h.b16 %v200
    %v419 = vunpack.c.l.b16 %v201
    %v420 = vunpack.c.h.b16 %v201
    %v421 = vunpack.c.l.b16 %v202
    %v422 = vunpack.c.h.b16 %v202
    %v423 = vunpack.c.l.b16 %v203
    %v424 = vunpack.c.h.b16 %v203
    %v425 = vunpack.c.l.b16 %v204
    %v426 = vunpack.c.h.b16 %v204
    %v427 = vunpack.c.l.b16 %v205
    %v428 = vunpack.c.h.b16 %v205
    %v429 = vunpack.c.l.b16 %v206
    %v430 = vunpack.c.h.b16 %v206
    %v431 = vpack.c.b16 %v371, %v367
    %v432 = vpack.c.b16 %v372, %v368
    %v433 = vpack.c.b16 %v373, %v369
    %v434 = vpack.c.b16 %v374, %v370
    %v435 = vpack.c.b16 %v379, %v375
    %v436 = vpack.c.b16 %v380, %v376
    %v437 = vpack.c.b16 %v381, %v377
    %v438 = vpack.c.b16 %v382, %v378
    %v439 = vpack.c.b16 %v387, %v383
    %v440 = vpack.c.b16 %v388, %v384
    %v441 = vpack.c.b16 %v389, %v385
    %v442 = vpack.c.b16 %v390, %v386
    %v443 = vpack.c.b16 %v395, %v391
    %v444 = vpack.c.b16 %v396, %v392
    %v445 = vpack.c.b16 %v397, %v393
    %v446 = vpack.c.b16 %v398, %v394
    %v447 = vpack.c.b16 %v403, %v399
    %v448 = vpack.c.b16 %v404, %v400
    %v449 = vpack.c.b16 %v405, %v401
    %v450 = vpack.c.b16 %v406, %v402
    %v451 = vpack.c.b16 %v411, %v407
    %v452 = vpack.c.b16 %v412, %v408
    %v453 = vpack.c.b16 %v413, %v409
    %v454 = vpack.c.b16 %v414, %v410
    %v455 = vpack.c.b16 %v419, %v415
    %v456 = vpack.c.b16 %v420, %v416
    %v457 = vpack.c.b16 %v421, %v417
    %v458 = vpack.c.b16 %v422, %v418
    %v459 = vpack.c.b16 %v427, %v423
    %v460 = vpack.c.b16 %v428, %v424
    %v461 = vpack.c.b16 %v429, %v425
    %v462 = vpack.c.b16 %v430, %v426
    %v623 = vunpack.c.l.b16 %v207
    %v624 = vunpack.c.h.b16 %v207
    %v625 = vunpack.c.l.b16 %v208
    %v626 = vunpack.c.h.b16 %v208
    %v627 = vunpack.c.l.b16 %v209
    %v628 = vunpack.c.h.b16 %v209
    %v629 = vunpack.c.l.b16 %v210
    %v630 = vunpack.c.h.b16 %v210
    %v631 = vunpack.c.l.b16 %v211
    %v632 = vunpack.c.h.b16 %v211
    %v633 = vunpack.c.l.b16 %v212
    %v634 = vunpack.c.h.b16 %v212
    %v635 = vunpack.c.l.b16 %v213
    %v636 = vunpack.c.h.b16 %v213
    %v637 = vunpack.c.l.b16 %v214
    %v638 = vunpack.c.h.b16 %v214
    %v639 = vunpack.c.l.b16 %v215
    %v640 = vunpack.c.h.b16 %v215
    %v641 = vunpack.c.l.b16 %v216
    %v642 = vunpack.c.h.b16 %v216
    %v643 = vunpack.c.l.b16 %v217
    %v644 = vunpack.c.h.b16 %v217
    %v645 = vunpack.c.l.b16 %v218
    %v646 = vunpack.c.h.b16 %v218
    %v647 = vunpack.c.l.b16 %v219
    %v648 = vunpack.c.h.b16 %v219
    %v649 = vunpack.c.l.b16 %v220
    %v650 = vunpack.c.h.b16 %v220
    %v651 = vunpack.c.l.b16 %v221
    %v652 = vunpack.c.h.b16 %v221
    %v653 = vunpack.c.l.b16 %v222
    %v654 = vunpack.c.h.b16 %v222
    %v655 = vunpack.c.l.b16 %v223
    %v656 = vunpack.c.h.b16 %v223
    %v657 = vunpack.c.l.b16 %v224
    %v658 = vunpack.c.h.b16 %v224
    %v659 = vunpack.c.l.b16 %v225
    %v660 = vunpack.c.h.b16 %v225
    %v661 = vunpack.c.l.b16 %v226
    %v662 = vunpack.c.h.b16 %v226
    %v663 = vunpack.c.l.b16 %v227
    %v664 = vunpack.c.h.b16 %v227
    %v665 = vunpack.c.l.b16 %v228
    %v666 = vunpack.c.h.b16 %v228
    %v667 = vunpack.c.l.b16 %v229
    %v668 = vunpack.c.h.b16 %v229
    %v669 = vunpack.c.l.b16 %v230
    %v670 = vunpack.c.h.b16 %v230
    %v671 = vunpack.c.l.b16 %v231
    %v672 = vunpack.c.h.b16 %v231
    %v673 = vunpack.c.l.b16 %v232
    %v674 = vunpack.c.h.b16 %v232
    %v675 = vunpack.c.l.b16 %v233
    %v676 = vunpack.c.h.b16 %v233
    %v677 = vunpack.c.l.b16 %v234
    %v678 = vunpack.c.h.b16 %v234
    %v679 = vunpack.c.l.b16 %v235
    %v680 = vunpack.c.h.b16 %v235
    %v681 = vunpack.c.l.b16 %v236
    %v682 = vunpack.c.h.b16 %v236
    %v683 = vunpack.c.l.b16 %v237
    %v684 = vunpack.c.h.b16 %v237
    %v685 = vunpack.c.l.b16 %v238
    %v686 = vunpack.c.h.b16 %v238
    %v687 = vunpack.c.l.b16 %v239
    %v688 = vunpack.c.h.b16 %v239
    %v689 = vunpack.c.l.b16 %v240
    %v690 = vunpack.c.h.b16 %v240
    %v691 = vunpack.c.l.b16 %v241
    %v692 = vunpack.c.h.b16 %v241
    %v693 = vunpack.c.l.b16 %v242
    %v694 = vunpack.c.h.b16 %v242
    %v695 = vunpack.c.l.b16 %v243
    %v696 = vunpack.c.h.b16 %v243
    %v697 = vunpack.c.l.b16 %v244
    %v698 = vunpack.c.h.b16 %v244
    %v699 = vunpack.c.l.b16 %v245
    %v700 = vunpack.c.h.b16 %v245
    %v701 = vunpack.c.l.b16 %v246
    %v702 = vunpack.c.h.b16 %v246
    %v703 = vunpack.c.l.b16 %v247
    %v704 = vunpack.c.h.b16 %v247
    %v705 = vunpack.c.l.b16 %v248
    %v706 = vunpack.c.h.b16 %v248
    %v707 = vunpack.c.l.b16 %v249
    %v708 = vunpack.c.h.b16 %v249
    %v709 = vunpack.c.l.b16 %v250
    %v710 = vunpack.c.h.b16 %v250
    %v711 = vunpack.c.l.b16 %v251
    %v712 = vunpack.c.h.b16 %v251
    %v713 = vunpack.c.l.b16 %v252
    %v714 = vunpack.c.h.b16 %v252
    %v715 = vunpack.c.l.b16 %v253
    %v716 = vunpack.c.h.b16 %v253
    %v717 = vunpack.c.l.b16 %v254
    %v718 = vunpack.c.h.b16 %v254
    %v719 = vunpack.c.l.b16 %v255
    %v720 = vunpack.c.h.b16 %v255
    %v721 = vunpack.c.l.b16 %v256
    %v722 = vunpack.c.h.b16 %v256
    %v723 = vunpack.c.l.b16 %v257
    %v724 = vunpack.c.h.b16 %v257
    %v725 = vunpack.c.l.b16 %v258
    %v726 = vunpack.c.h.b16 %v258
    %v727 = vunpack.c.l.b16 %v259
    %v728 = vunpack.c.h.b16 %v259
    %v729 = vunpack.c.l.b16 %v260
    %v730 = vunpack.c.h.b16 %v260
    %v731 = vunpack.c.l.b16 %v261
    %v732 = vunpack.c.h.b16 %v261
    %v733 = vunpack.c.l.b16 %v262
    %v734 = vunpack.c.h.b16 %v262
    %v735 = vunpack.c.l.b16 %v263
    %v736 = vunpack.c.h.b16 %v263
    %v737 = vunpack.c.l.b16 %v264
    %v738 = vunpack.c.h.b16 %v264
    %v739 = vunpack.c.l.b16 %v265
    %v740 = vunpack.c.h.b16 %v265
    %v741 = vunpack.c.l.b16 %v266
    %v742 = vunpack.c.h.b16 %v266
    %v743 = vunpack.c.l.b16 %v267
    %v744 = vunpack.c.h.b16 %v267
    %v745 = vunpack.c.l.b16 %v268
    %v746 = vunpack.c.h.b16 %v268
    %v747 = vunpack.c.l.b16 %v269
    %v748 = vunpack.c.h.b16 %v269
    %v749 = vunpack.c.l.b16 %v270
    %v750 = vunpack.c.h.b16 %v270
    %v751 = vunpack.c.l.b16 %v271
    %v752 = vunpack.c.h.b16 %v271
    %v753 = vunpack.c.l.b16 %v272
    %v754 = vunpack.c.h.b16 %v272
    %v755 = vunpack.c.l.b16 %v273
    %v756 = vunpack.c.h.b16 %v273
    %v757 = vunpack.c.l.b16 %v274
    %v758 = vunpack.c.h.b16 %v274
    %v759 = vunpack.c.l.b16 %v275
    %v760 = vunpack.c.h.b16 %v275
    %v761 = vunpack.c.l.b16 %v276
    %v762 = vunpack.c.h.b16 %v276
    %v763 = vunpack.c.l.b16 %v277
    %v764 = vunpack.c.h.b16 %v277
    %v765 = vunpack.c.l.b16 %v278
    %v766 = vunpack.c.h.b16 %v278
    %v767 = vunpack.c.l.b16 %v279
    %v768 = vunpack.c.h.b16 %v279
    %v769 = vunpack.c.l.b16 %v280
    %v770 = vunpack.c.h.b16 %v280
    %v771 = vunpack.c.l.b16 %v281
    %v772 = vunpack.c.h.b16 %v281
    %v773 = vunpack.c.l.b16 %v282
    %v774 = vunpack.c.h.b16 %v282
    %v775 = vunpack.c.l.b16 %v283
    %v776 = vunpack.c.h.b16 %v283
    %v777 = vunpack.c.l.b16 %v284
    %v778 = vunpack.c.h.b16 %v284
    %v779 = vunpack.c.l.b16 %v285
    %v780 = vunpack.c.h.b16 %v285
    %v781 = vunpack.c.l.b16 %v286
    %v782 = vunpack.c.h.b16 %v286
    %v783 = vunpack.c.l.b16 %v287
    %v784 = vunpack.c.h.b16 %v287
    %v785 = vunpack.c.l.b16 %v288
    %v786 = vunpack.c.h.b16 %v288
    %v787 = vunpack.c.l.b16 %v289
    %v788 = vunpack.c.h.b16 %v289
    %v789 = vunpack.c.l.b16 %v290
    %v790 = vunpack.c.h.b16 %v290
    %v791 = vunpack.c.l.b16 %v291
    %v792 = vunpack.c.h.b16 %v291
    %v793 = vunpack.c.l.b16 %v292
    %v794 = vunpack.c.h.b16 %v292
    %v795 = vunpack.c.l.b16 %v293
    %v796 = vunpack.c.h.b16 %v293
    %v797 = vunpack.c.l.b16 %v294
    %v798 = vunpack.c.h.b16 %v294
    %v799 = vunpack.c.l.b16 %v295
    %v800 = vunpack.c.h.b16 %v295
    %v801 = vunpack.c.l.b16 %v296
    %v802 = vunpack.c.h.b16 %v296
    %v803 = vunpack.c.l.b16 %v297
    %v804 = vunpack.c.h.b16 %v297
    %v805 = vunpack.c.l.b16 %v298
    %v806 = vunpack.c.h.b16 %v298
    %v807 = vunpack.c.l.b16 %v299
    %v808 = vunpack.c.h.b16 %v299
    %v809 = vunpack.c.l.b16 %v300
    %v810 = vunpack.c.h.b16 %v300
    %v811 = vunpack.c.l.b16 %v301
    %v812 = vunpack.c.h.b16 %v301
    %v813 = vunpack.c.l.b16 %v302
    %v814 = vunpack.c.h.b16 %v302
    %v815 = vunpack.c.l.b16 %v303
    %v816 = vunpack.c.h.b16 %v303
    %v817 = vunpack.c.l.b16 %v304
    %v818 = vunpack.c.h.b16 %v304
    %v819 = vunpack.c.l.b16 %v305
    %v820 = vunpack.c.h.b16 %v305
    %v821 = vunpack.c.l.b16 %v306
    %v822 = vunpack.c.h.b16 %v306
    %v823 = vunpack.c.l.b16 %v307
    %v824 = vunpack.c.h.b16 %v307
    %v825 = vunpack.c.l.b16 %v308
    %v826 = vunpack.c.h.b16 %v308
    %v827 = vunpack.c.l.b16 %v309
    %v828 = vunpack.c.h.b16 %v309
    %v829 = vunpack.c.l.b16 %v310
    %v830 = vunpack.c.h.b16 %v310
    %v831 = vunpack.c.l.b16 %v311
    %v832 = vunpack.c.h.b16 %v311
    %v833 = vunpack.c.l.b16 %v312
    %v834 = vunpack.c.h.b16 %v312
    %v835 = vunpack.c.l.b16 %v313
    %v836 = vunpack.c.h.b16 %v313
    %v837 = vunpack.c.l.b16 %v314
    %v838 = vunpack.c.h.b16 %v314
    %v839 = vunpack.c.l.b16 %v315
    %v840 = vunpack.c.h.b16 %v315
    %v841 = vunpack.c.l.b16 %v316
    %v842 = vunpack.c.h.b16 %v316
    %v843 = vunpack.c.l.b16 %v317
    %v844 = vunpack.c.h.b16 %v317
    %v845 = vunpack.c.l.b16 %v318
    %v846 = vunpack.c.h.b16 %v318
    %v847 = vunpack.c.l.b16 %v319
    %v848 = vunpack.c.h.b16 %v319
    %v849 = vunpack.c.l.b16 %v320
    %v850 = vunpack.c.h.b16 %v320
    %v851 = vunpack.c.l.b16 %v321
    %v852 = vunpack.c.h.b16 %v321
    %v853 = vunpack.c.l.b16 %v322
    %v854 = vunpack.c.h.b16 %v322
    %v855 = vunpack.c.l.b16 %v323
    %v856 = vunpack.c.h.b16 %v323
    %v857 = vunpack.c.l.b16 %v324
    %v858 = vunpack.c.h.b16 %v324
    %v859 = vunpack.c.l.b16 %v325
    %v860 = vunpack.c.h.b16 %v325
    %v861 = vunpack.c.l.b16 %v326
    %v862 = vunpack.c.h.b16 %v326
    %v863 = vunpack.c.l.b16 %v327
    %v864 = vunpack.c.h.b16 %v327
    %v865 = vunpack.c.l.b16 %v328
    %v866 = vunpack.c.h.b16 %v328
    %v867 = vunpack.c.l.b16 %v329
    %v868 = vunpack.c.h.b16 %v329
    %v869 = vunpack.c.l.b16 %v330
    %v870 = vunpack.c.h.b16 %v330
    %v871 = vunpack.c.l.b16 %v331
    %v872 = vunpack.c.h.b16 %v331
    %v873 = vunpack.c.l.b16 %v332
    %v874 = vunpack.c.h.b16 %v332
    %v875 = vunpack.c.l.b16 %v333
    %v876 = vunpack.c.h.b16 %v333
    %v877 = vunpack.c.l.b16 %v334
    %v878 = vunpack.c.h.b16 %v334
    %v879 = vpack.c.b16 %v627, %v623
    %v880 = vpack.c.b16 %v628, %v624
    %v881 = vpack.c.b16 %v629, %v625
    %v882 = vpack.c.b16 %v630, %v626
    %v883 = vpack.c.b16 %v635, %v631
    %v884 = vpack.c.b16 %v636, %v632
    %v885 = vpack.c.b16 %v637, %v633
    %v886 = vpack.c.b16 %v638, %v634
    %v887 = vpack.c.b16 %v643, %v639
    %v888 = vpack.c.b16 %v644, %v640
    %v889 = vpack.c.b16 %v645, %v641
    %v890 = vpack.c.b16 %v646, %v642
    %v891 = vpack.c.b16 %v651, %v647
    %v892 = vpack.c.b16 %v652, %v648
    %v893 = vpack.c.b16 %v653, %v649
    %v894 = vpack.c.b16 %v654, %v650
    %v895 = vpack.c.b16 %v659, %v655
    %v896 = vpack.c.b16 %v660, %v656
    %v897 = vpack.c.b16 %v661, %v657
    %v898 = vpack.c.b16 %v662, %v658
    %v899 = vpack.c.b16 %v667, %v663
    %v900 = vpack.c.b16 %v668, %v664
    %v901 = vpack.c.b16 %v669, %v665
    %v902 = vpack.c.b16 %v670, %v666
    %v903 = vpack.c.b16 %v675, %v671
    %v904 = vpack.c.b16 %v676, %v672
    %v905 = vpack.c.b16 %v677, %v673
    %v906 = vpack.c.b16 %v678, %v674
    %v907 = vpack.c.b16 %v683, %v679
    %v908 = vpack.c.b16 %v684, %v680
    %v909 = vpack.c.b16 %v685, %v681
    %v910 = vpack.c.b16 %v686, %v682
    %v911 = vpack.c.b16 %v691, %v687
    %v912 = vpack.c.b16 %v692, %v688
    %v913 = vpack.c.b16 %v693, %v689
    %v914 = vpack.c.b16 %v694, %v690
    %v915 = vpack.c.b16 %v699, %v695
    %v916 = vpack.c.b16 %v700, %v696
    %v917 = vpack.c.b16 %v701, %v697
    %v918 = vpack.c.b16 %v702, %v698
    %v919 = vpack.c.b16 %v707, %v703
    %v920 = vpack.c.b16 %v708, %v704
    %v921 = vpack.c.b16 %v709, %v705
    %v922 = vpack.c.b16 %v710, %v706
    %v923 = vpack.c.b16 %v715, %v711
    %v924 = vpack.c.b16 %v716, %v712
    %v925 = vpack.c.b16 %v717, %v713
    %v926 = vpack.c.b16 %v718, %v714
    %v927 = vpack.c.b16 %v723, %v719
    %v928 = vpack.c.b16 %v724, %v720
    %v929 = vpack.c.b16 %v725, %v721
    %v930 = vpack.c.b16 %v726, %v722
    %v931 = vpack.c.b16 %v731, %v727
    %v932 = vpack.c.b16 %v732, %v728
    %v933 = vpack.c.b16 %v733, %v729
    %v934 = vpack.c.b16 %v734, %v730
    %v935 = vpack.c.b16 %v739, %v735
    %v936 = vpack.c.b16 %v740, %v736
    %v937 = vpack.c.b16 %v741, %v737
    %v938 = vpack.c.b16 %v742, %v738
    %v939 = vpack.c.b16 %v747, %v743
    %v940 = vpack.c.b16 %v748, %v744
    %v941 = vpack.c.b16 %v749, %v745
    %v942 = vpack.c.b16 %v750, %v746
    %v943 = vpack.c.b16 %v755, %v751
    %v944 = vpack.c.b16 %v756, %v752
    %v945 = vpack.c.b16 %v757, %v753
    %v946 = vpack.c.b16 %v758, %v754
    %v947 = vpack.c.b16 %v763, %v759
    %v948 = vpack.c.b16 %v764, %v760
    %v949 = vpack.c.b16 %v765, %v761
    %v950 = vpack.c.b16 %v766, %v762
    %v951 = vpack.c.b16 %v771, %v767
    %v952 = vpack.c.b16 %v772, %v768
    %v953 = vpack.c.b16 %v773, %v769
    %v954 = vpack.c.b16 %v774, %v770
    %v955 = vpack.c.b16 %v779, %v775
    %v956 = vpack.c.b16 %v780, %v776
    %v957 = vpack.c.b16 %v781, %v777
    %v958 = vpack.c.b16 %v782, %v778
    %v959 = vpack.c.b16 %v787, %v783
    %v960 = vpack.c.b16 %v788, %v784
    %v961 = vpack.c.b16 %v789, %v785
    %v962 = vpack.c.b16 %v790, %v786
    %v963 = vpack.c.b16 %v795, %v791
    %v964 = vpack.c.b16 %v796, %v792
    %v965 = vpack.c.b16 %v797, %v793
    %v966 = vpack.c.b16 %v798, %v794
    %v967 = vpack.c.b16 %v803, %v799
    %v968 = vpack.c.b16 %v804, %v800
    %v969 = vpack.c.b16 %v805, %v801
    %v970 = vpack.c.b16 %v806, %v802
    %v971 = vpack.c.b16 %v811, %v807
    %v972 = vpack.c.b16 %v812, %v808
    %v973 = vpack.c.b16 %v813, %v809
    %v974 = vpack.c.b16 %v814, %v810
    %v975 = vpack.c.b16 %v819, %v815
    %v976 = vpack.c.b16 %v820, %v816
    %v977 = vpack.c.b16 %v821, %v817
    %v978 = vpack.c.b16 %v822, %v818
    %v979 = vpack.c.b16 %v827, %v823
    %v980 = vpack.c.b16 %v828, %v824
    %v981 = vpack.c.b16 %v829, %v825
    %v982 = vpack.c.b16 %v830, %v826
    %v983 = vpack.c.b16 %v835, %v831
    %v984 = vpack.c.b16 %v836, %v832
    %v985 = vpack.c.b16 %v837, %v833
    %v986 = vpack.c.b16 %v838, %v834
    %v987 = vpack.c.b16 %v843, %v839
    %v988 = vpack.c.b16 %v844, %v840
    %v989 = vpack.c.b16 %v845, %v841
    %v990 = vpack.c.b16 %v846, %v842
    %v991 = vpack.c.b16 %v851, %v847
    %v992 = vpack.c.b16 %v852, %v848
    %v993 = vpack.c.b16 %v853, %v849
    %v994 = vpack.c.b16 %v854, %v850
    %v995 = vpack.c.b16 %v859, %v855
    %v996 = vpack.c.b16 %v860, %v856
    %v997 = vpack.c.b16 %v861, %v857
    %v998 = vpack.c.b16 %v862, %v858
    %v999 = vpack.c.b16 %v867, %v863
    %v1000 = vpack.c.b16 %v868, %v864
    %v1001 = vpack.c.b16 %v869, %v865
    %v1002 = vpack.c.b16 %v870, %v866
    %v1003 = vpack.c.b16 %v875, %v871
    %v1004 = vpack.c.b16 %v876, %v872
    %v1005 = vpack.c.b16 %v877, %v873
    %v1006 = vpack.c.b16 %v878, %v874
    %1135 = vmatprep.subr.bf16.mxu0 %v880
    %1136 = vmatpush1.bf16.msra.mxu0 %v879
    %1137 = vmatprep.subr.bf16.mxu0 %v884
    %1138 = vmatpush1.bf16.msra.mxu0 %v883
    %1139 = vmatprep.subr.bf16.mxu0 %v888
    %1140 = vmatpush1.bf16.msra.mxu0 %v887
    %1141 = vmatprep.subr.bf16.mxu0 %v892
    %1142 = vmatpush1.bf16.msra.mxu0 %v891
    %1143 = vmatprep.subr.bf16.mxu0 %v896
    %1144 = vmatpush1.bf16.msra.mxu0 %v895
    %1145 = vmatprep.subr.bf16.mxu0 %v900
    %1146 = vmatpush1.bf16.msra.mxu0 %v899
    %1147 = vmatprep.subr.bf16.mxu0 %v904
    %1148 = vmatpush1.bf16.msra.mxu0 %v903
    %1149 = vmatprep.subr.bf16.mxu0 %v908
    %1150 = vmatpush1.bf16.msra.mxu0 %v907
    %1151 = vmatprep.subr.bf16.mxu0 %v912
    %1152 = vmatpush1.bf16.msra.mxu0 %v911
    %1153 = vmatprep.subr.bf16.mxu0 %v916
    %1154 = vmatpush1.bf16.msra.mxu0 %v915
    %1155 = vmatprep.subr.bf16.mxu0 %v920
    %1156 = vmatpush1.bf16.msra.mxu0 %v919
    %1157 = vmatprep.subr.bf16.mxu0 %v924
    %1158 = vmatpush1.bf16.msra.mxu0 %v923
    %1159 = vmatprep.subr.bf16.mxu0 %v928
    %1160 = vmatpush1.bf16.msra.mxu0 %v927
    %1161 = vmatprep.subr.bf16.mxu0 %v932
    %1162 = vmatpush1.bf16.msra.mxu0 %v931
    %1163 = vmatprep.subr.bf16.mxu0 %v936
    %1164 = vmatpush1.bf16.msra.mxu0 %v935
    %1165 = vmatprep.subr.bf16.mxu0 %v940
    %1166 = vmatpush1.bf16.msra.mxu0 %v939
    %1167 = vmatprep.mubr.bf16.mxu0 %v432
    %1168 = vmatmul.mubr.bf16.gmra.mrb[0].mxu0 %v431
    %v1169 = vpop.f32.mrb[0].mxu0
    %v1170 = vadd.f32 0.0, %v1169
    %v1171 = vpop.f32.mrb[0].mxu0
    %v1172 = vadd.f32 0.0, %v1171
    %v1173 = vpop.f32.mrb[0].mxu0
    %v1174 = vadd.f32 0.0, %v1173
    %v1175 = vpop.f32.mrb[0].mxu0
    %v1176 = vadd.f32 0.0, %v1175
    %1177 = vmatprep.mubr.bf16.mxu0 %v436
    %1178 = vmatmul.mubr.bf16.gmra.mrb[0].mxu0 %v435
    %v1179 = vpop.f32.mrb[0].mxu0
    %v1180 = vadd.f32 0.0, %v1179
    %v1181 = vpop.f32.mrb[0].mxu0
    %v1182 = vadd.f32 0.0, %v1181
    %v1183 = vpop.f32.mrb[0].mxu0
    %v1184 = vadd.f32 0.0, %v1183
    %v1185 = vpop.f32.mrb[0].mxu0
    %v1186 = vadd.f32 0.0, %v1185
    %1187 = vmatprep.mubr.bf16.mxu0 %v440
    %1188 = vmatmul.mubr.bf16.gmra.mrb[0].mxu0 %v439
    %v1189 = vpop.f32.mrb[0].mxu0
    %v1190 = vadd.f32 0.0, %v1189
    %v1191 = vpop.f32.mrb[0].mxu0
    %v1192 = vadd.f32 0.0, %v1191
    %v1193 = vpop.f32.mrb[0].mxu0
    %v1194 = vadd.f32 0.0, %v1193
    %v1195 = vpop.f32.mrb[0].mxu0
    %v1196 = vadd.f32 0.0, %v1195
    %1197 = vmatprep.mubr.bf16.mxu0 %v444
    %1198 = vmatmul.mubr.bf16.gmra.mrb[0].mxu0 %v443
    %v1199 = vpop.f32.mrb[0].mxu0
    %v1200 = vadd.f32 0.0, %v1199
    %v1201 = vpop.f32.mrb[0].mxu0
    %v1202 = vadd.f32 0.0, %v1201
    %v1203 = vpop.f32.mrb[0].mxu0
    %v1204 = vadd.f32 0.0, %v1203
    %v1205 = vpop.f32.mrb[0].mxu0
    %v1206 = vadd.f32 0.0, %v1205
    %1207 = vmatprep.mubr.bf16.mxu0 %v448
    %1208 = vmatmul.mubr.bf16.gmra.mrb[0].mxu0 %v447
    %v1209 = vpop.f32.mrb[0].mxu0
    %v1210 = vadd.f32 0.0, %v1209
    %v1211 = vpop.f32.mrb[0].mxu0
    %v1212 = vadd.f32 0.0, %v1211
    %v1213 = vpop.f32.mrb[0].mxu0
    %v1214 = vadd.f32 0.0, %v1213
    %v1215 = vpop.f32.mrb[0].mxu0
    %v1216 = vadd.f32 0.0, %v1215
    %1217 = vmatprep.mubr.bf16.mxu0 %v452
    %1218 = vmatmul.mubr.bf16.gmra.mrb[0].mxu0 %v451
    %v1219 = vpop.f32.mrb[0].mxu0
    %v1220 = vadd.f32 0.0, %v1219
    %v1221 = vpop.f32.mrb[0].mxu0
    %v1222 = vadd.f32 0.0, %v1221
    %v1223 = vpop.f32.mrb[0].mxu0
    %v1224 = vadd.f32 0.0, %v1223
    %v1225 = vpop.f32.mrb[0].mxu0
    %v1226 = vadd.f32 0.0, %v1225
    %1227 = vmatprep.mubr.bf16.mxu0 %v456
    %1228 = vmatmul.mubr.bf16.gmra.mrb[0].mxu0 %v455
    %v1229 = vpop.f32.mrb[0].mxu0
    %v1230 = vadd.f32 0.0, %v1229
    %v1231 = vpop.f32.mrb[0].mxu0
    %v1232 = vadd.f32 0.0, %v1231
    %v1233 = vpop.f32.mrb[0].mxu0
    %v1234 = vadd.f32 0.0, %v1233
    %v1235 = vpop.f32.mrb[0].mxu0
    %v1236 = vadd.f32 0.0, %v1235
    %1237 = vmatprep.mubr.bf16.mxu0 %v460
    %1238 = vmatmul.mubr.bf16.gmra.mrb[0].mxu0 %v459
    %v1239 = vpop.f32.mrb[0].mxu0
    %v1240 = vadd.f32 0.0, %v1239
    %v1241 = vpop.f32.mrb[0].mxu0
    %v1242 = vadd.f32 0.0, %v1241
    %v1243 = vpop.f32.mrb[0].mxu0
    %v1244 = vadd.f32 0.0, %v1243
    %v1245 = vpop.f32.mrb[0].mxu0
    %v1246 = vadd.f32 0.0, %v1245
    %1247 = vdwg.mxu0
    %1248 = vmatprep.subr.bf16.mxu0 %v944
    %1249 = vmatpush1.bf16.msra.mxu0 %v943
    %1250 = vmatprep.subr.bf16.mxu0 %v948
    %1251 = vmatpush1.bf16.msra.mxu0 %v947
    %1252 = vmatprep.subr.bf16.mxu0 %v952
    %1253 = vmatpush1.bf16.msra.mxu0 %v951
    %1254 = vmatprep.subr.bf16.mxu0 %v956
    %1255 = vmatpush1.bf16.msra.mxu0 %v955
    %1256 = vmatprep.subr.bf16.mxu0 %v960
    %1257 = vmatpush1.bf16.msra.mxu0 %v959
    %1258 = vmatprep.subr.bf16.mxu0 %v964
    %1259 = vmatpush1.bf16.msra.mxu0 %v963
    %1260 = vmatprep.subr.bf16.mxu0 %v968
    %1261 = vmatpush1.bf16.msra.mxu0 %v967
    %1262 = vmatprep.subr.bf16.mxu0 %v972
    %1263 = vmatpush1.bf16.msra.mxu0 %v971
    %1264 = vmatprep.subr.bf16.mxu0 %v976
    %1265 = vmatpush1.bf16.msra.mxu0 %v975
    %1266 = vmatprep.subr.bf16.mxu0 %v980
    %1267 = vmatpush1.bf16.msra.mxu0 %v979
    %1268 = vmatprep.subr.bf16.mxu0 %v984
    %1269 = vmatpush1.bf16.msra.mxu0 %v983
    %1270 = vmatprep.subr.bf16.mxu0 %v988
    %1271 = vmatpush1.bf16.msra.mxu0 %v987
    %1272 = vmatprep.subr.bf16.mxu0 %v992
    %1273 = vmatpush1.bf16.msra.mxu0 %v991
    %1274 = vmatprep.subr.bf16.mxu0 %v996
    %1275 = vmatpush1.bf16.msra.mxu0 %v995
    %1276 = vmatprep.subr.bf16.mxu0 %v1000
    %1277 = vmatpush1.bf16.msra.mxu0 %v999
    %1278 = vmatprep.subr.bf16.mxu0 %v1004
    %1279 = vmatpush1.bf16.msra.mxu0 %v1003
    %1280 = vmatprep.mubr.bf16.mxu0 %v434
    %1281 = vmatmul.mubr.bf16.gmra.mrb[0].mxu0 %v433
    %v1282 = vpop.f32.mrb[0].mxu0
    %v1283 = vadd.f32 %v1170, %v1282
    %v1284 = vpop.f32.mrb[0].mxu0
    %v1285 = vadd.f32 %v1172, %v1284
    %v1286 = vpop.f32.mrb[0].mxu0
    %v1287 = vadd.f32 %v1174, %v1286
    %v1288 = vpop.f32.mrb[0].mxu0
    %v1289 = vadd.f32 %v1176, %v1288
    %1290 = vmatprep.mubr.bf16.mxu0 %v438
    %1291 = vmatmul.mubr.bf16.gmra.mrb[0].mxu0 %v437
    %v1292 = vpop.f32.mrb[0].mxu0
    %v1293 = vadd.f32 %v1180, %v1292
    %v1294 = vpop.f32.mrb[0].mxu0
    %v1295 = vadd.f32 %v1182, %v1294
    %v1296 = vpop.f32.mrb[0].mxu0
    %v1297 = vadd.f32 %v1184, %v1296
    %v1298 = vpop.f32.mrb[0].mxu0
    %v1299 = vadd.f32 %v1186, %v1298
    %1300 = vmatprep.mubr.bf16.mxu0 %v442
    %1301 = vmatmul.mubr.bf16.gmra.mrb[0].mxu0 %v441
    %v1302 = vpop.f32.mrb[0].mxu0
    %v1303 = vadd.f32 %v1190, %v1302
    %v1304 = vpop.f32.mrb[0].mxu0
    %v1305 = vadd.f32 %v1192, %v1304
    %v1306 = vpop.f32.mrb[0].mxu0
    %v1307 = vadd.f32 %v1194, %v1306
    %v1308 = vpop.f32.mrb[0].mxu0
    %v1309 = vadd.f32 %v1196, %v1308
    %1310 = vmatprep.mubr.bf16.mxu0 %v446
    %1311 = vmatmul.mubr.bf16.gmra.mrb[0].mxu0 %v445
    %v1312 = vpop.f32.mrb[0].mxu0
    %v1313 = vadd.f32 %v1200, %v1312
    %v1314 = vpop.f32.mrb[0].mxu0
    %v1315 = vadd.f32 %v1202, %v1314
    %v1316 = vpop.f32.mrb[0].mxu0
    %v1317 = vadd.f32 %v1204, %v1316
    %v1318 = vpop.f32.mrb[0].mxu0
    %v1319 = vadd.f32 %v1206, %v1318
    %1320 = vmatprep.mubr.bf16.mxu0 %v450
    %1321 = vmatmul.mubr.bf16.gmra.mrb[0].mxu0 %v449
    %v1322 = vpop.f32.mrb[0].mxu0
    %v1323 = vadd.f32 %v1210, %v1322
    %v1324 = vpop.f32.mrb[0].mxu0
    %v1325 = vadd.f32 %v1212, %v1324
    %v1326 = vpop.f32.mrb[0].mxu0
    %v1327 = vadd.f32 %v1214, %v1326
    %v1328 = vpop.f32.mrb[0].mxu0
    %v1329 = vadd.f32 %v1216, %v1328
    %1330 = vmatprep.mubr.bf16.mxu0 %v454
    %1331 = vmatmul.mubr.bf16.gmra.mrb[0].mxu0 %v453
    %v1332 = vpop.f32.mrb[0].mxu0
    %v1333 = vadd.f32 %v1220, %v1332
    %v1334 = vpop.f32.mrb[0].mxu0
    %v1335 = vadd.f32 %v1222, %v1334
    %v1336 = vpop.f32.mrb[0].mxu0
    %v1337 = vadd.f32 %v1224, %v1336
    %v1338 = vpop.f32.mrb[0].mxu0
    %v1339 = vadd.f32 %v1226, %v1338
    %1340 = vmatprep.mubr.bf16.mxu0 %v458
    %1341 = vmatmul.mubr.bf16.gmra.mrb[0].mxu0 %v457
    %v1342 = vpop.f32.mrb[0].mxu0
    %v1343 = vadd.f32 %v1230, %v1342
    %v1344 = vpop.f32.mrb[0].mxu0
    %v1345 = vadd.f32 %v1232, %v1344
    %v1346 = vpop.f32.mrb[0].mxu0
    %v1347 = vadd.f32 %v1234, %v1346
    %v1348 = vpop.f32.mrb[0].mxu0
    %v1349 = vadd.f32 %v1236, %v1348
    %1350 = vmatprep.mubr.bf16.mxu0 %v462
    %1351 = vmatmul.mubr.bf16.gmra.mrb[0].mxu0 %v461
    %v1352 = vpop.f32.mrb[0].mxu0
    %v1353 = vadd.f32 %v1240, %v1352
    %v1354 = vpop.f32.mrb[0].mxu0
    %v1355 = vadd.f32 %v1242, %v1354
    %v1356 = vpop.f32.mrb[0].mxu0
    %v1357 = vadd.f32 %v1244, %v1356
    %v1358 = vpop.f32.mrb[0].mxu0
    %v1359 = vadd.f32 %v1246, %v1358
    %1360 = vdwg.mxu0
    %1361 = vmatprep.subr.bf16.mxu0 %v882
    %1362 = vmatpush1.bf16.msra.mxu0 %v881
    %1363 = vmatprep.subr.bf16.mxu0 %v886
    %1364 = vmatpush1.bf16.msra.mxu0 %v885
    %1365 = vmatprep.subr.bf16.mxu0 %v890
    %1366 = vmatpush1.bf16.msra.mxu0 %v889
    %1367 = vmatprep.subr.bf16.mxu0 %v894
    %1368 = vmatpush1.bf16.msra.mxu0 %v893
    %1369 = vmatprep.subr.bf16.mxu0 %v898
    %1370 = vmatpush1.bf16.msra.mxu0 %v897
    %1371 = vmatprep.subr.bf16.mxu0 %v902
    %1372 = vmatpush1.bf16.msra.mxu0 %v901
    %1373 = vmatprep.subr.bf16.mxu0 %v906
    %1374 = vmatpush1.bf16.msra.mxu0 %v905
    %1375 = vmatprep.subr.bf16.mxu0 %v910
    %1376 = vmatpush1.bf16.msra.mxu0 %v909
    %1377 = vmatprep.subr.bf16.mxu0 %v914
    %1378 = vmatpush1.bf16.msra.mxu0 %v913
    %1379 = vmatprep.subr.bf16.mxu0 %v918
    %1380 = vmatpush1.bf16.msra.mxu0 %v917
    %1381 = vmatprep.subr.bf16.mxu0 %v922
    %1382 = vmatpush1.bf16.msra.mxu0 %v921
    %1383 = vmatprep.subr.bf16.mxu0 %v926
    %1384 = vmatpush1.bf16.msra.mxu0 %v925
    %1385 = vmatprep.subr.bf16.mxu0 %v930
    %1386 = vmatpush1.bf16.msra.mxu0 %v929
    %1387 = vmatprep.subr.bf16.mxu0 %v934
    %1388 = vmatpush1.bf16.msra.mxu0 %v933
    %1389 = vmatprep.subr.bf16.mxu0 %v938
    %1390 = vmatpush1.bf16.msra.mxu0 %v937
    %1391 = vmatprep.subr.bf16.mxu0 %v942
    %1392 = vmatpush1.bf16.msra.mxu0 %v941
    %1393 = vmatprep.mubr.bf16.mxu0 %v432
    %1394 = vmatmul.mubr.bf16.gmra.mrb[0].mxu0 %v431
    %v1395 = vpop.f32.mrb[0].mxu0
    %v1396 = vadd.f32 0.0, %v1395
    %v1397 = vpop.f32.mrb[0].mxu0
    %v1398 = vadd.f32 0.0, %v1397
    %v1399 = vpop.f32.mrb[0].mxu0
    %v1400 = vadd.f32 0.0, %v1399
    %v1401 = vpop.f32.mrb[0].mxu0
    %v1402 = vadd.f32 0.0, %v1401
    %1403 = vmatprep.mubr.bf16.mxu0 %v436
    %1404 = vmatmul.mubr.bf16.gmra.mrb[0].mxu0 %v435
    %v1405 = vpop.f32.mrb[0].mxu0
    %v1406 = vadd.f32 0.0, %v1405
    %v1407 = vpop.f32.mrb[0].mxu0
    %v1408 = vadd.f32 0.0, %v1407
    %v1409 = vpop.f32.mrb[0].mxu0
    %v1410 = vadd.f32 0.0, %v1409
    %v1411 = vpop.f32.mrb[0].mxu0
    %v1412 = vadd.f32 0.0, %v1411
    %1413 = vmatprep.mubr.bf16.mxu0 %v440
    %1414 = vmatmul.mubr.bf16.gmra.mrb[0].mxu0 %v439
    %v1415 = vpop.f32.mrb[0].mxu0
    %v1416 = vadd.f32 0.0, %v1415
    %v1417 = vpop.f32.mrb[0].mxu0
    %v1418 = vadd.f32 0.0, %v1417
    %v1419 = vpop.f32.mrb[0].mxu0
    %v1420 = vadd.f32 0.0, %v1419
    %v1421 = vpop.f32.mrb[0].mxu0
    %v1422 = vadd.f32 0.0, %v1421
    %1423 = vmatprep.mubr.bf16.mxu0 %v444
    %1424 = vmatmul.mubr.bf16.gmra.mrb[0].mxu0 %v443
    %v1425 = vpop.f32.mrb[0].mxu0
    %v1426 = vadd.f32 0.0, %v1425
    %v1427 = vpop.f32.mrb[0].mxu0
    %v1428 = vadd.f32 0.0, %v1427
    %v1429 = vpop.f32.mrb[0].mxu0
    %v1430 = vadd.f32 0.0, %v1429
    %v1431 = vpop.f32.mrb[0].mxu0
    %v1432 = vadd.f32 0.0, %v1431
    %1433 = vmatprep.mubr.bf16.mxu0 %v448
    %1434 = vmatmul.mubr.bf16.gmra.mrb[0].mxu0 %v447
    %v1435 = vpop.f32.mrb[0].mxu0
    %v1436 = vadd.f32 0.0, %v1435
    %v1437 = vpop.f32.mrb[0].mxu0
    %v1438 = vadd.f32 0.0, %v1437
    %v1439 = vpop.f32.mrb[0].mxu0
    %v1440 = vadd.f32 0.0, %v1439
    %v1441 = vpop.f32.mrb[0].mxu0
    %v1442 = vadd.f32 0.0, %v1441
    %1443 = vmatprep.mubr.bf16.mxu0 %v452
    %1444 = vmatmul.mubr.bf16.gmra.mrb[0].mxu0 %v451
    %v1445 = vpop.f32.mrb[0].mxu0
    %v1446 = vadd.f32 0.0, %v1445
    %v1447 = vpop.f32.mrb[0].mxu0
    %v1448 = vadd.f32 0.0, %v1447
    %v1449 = vpop.f32.mrb[0].mxu0
    %v1450 = vadd.f32 0.0, %v1449
    %v1451 = vpop.f32.mrb[0].mxu0
    %v1452 = vadd.f32 0.0, %v1451
    %1453 = vmatprep.mubr.bf16.mxu0 %v456
    %1454 = vmatmul.mubr.bf16.gmra.mrb[0].mxu0 %v455
    %v1455 = vpop.f32.mrb[0].mxu0
    %v1456 = vadd.f32 0.0, %v1455
    %v1457 = vpop.f32.mrb[0].mxu0
    %v1458 = vadd.f32 0.0, %v1457
    %v1459 = vpop.f32.mrb[0].mxu0
    %v1460 = vadd.f32 0.0, %v1459
    %v1461 = vpop.f32.mrb[0].mxu0
    %v1462 = vadd.f32 0.0, %v1461
    %1463 = vmatprep.mubr.bf16.mxu0 %v460
    %1464 = vmatmul.mubr.bf16.gmra.mrb[0].mxu0 %v459
    %v1465 = vpop.f32.mrb[0].mxu0
    %v1466 = vadd.f32 0.0, %v1465
    %v1467 = vpop.f32.mrb[0].mxu0
    %v1468 = vadd.f32 0.0, %v1467
    %v1469 = vpop.f32.mrb[0].mxu0
    %v1470 = vadd.f32 0.0, %v1469
    %v1471 = vpop.f32.mrb[0].mxu0
    %v1472 = vadd.f32 0.0, %v1471
    %1473 = vdwg.mxu0
    %1474 = vmatprep.subr.bf16.mxu0 %v946
    %1475 = vmatpush1.bf16.msra.mxu0 %v945
    %1476 = vmatprep.subr.bf16.mxu0 %v950
    %1477 = vmatpush1.bf16.msra.mxu0 %v949
    %1478 = vmatprep.subr.bf16.mxu0 %v954
    %1479 = vmatpush1.bf16.msra.mxu0 %v953
    %1480 = vmatprep.subr.bf16.mxu0 %v958
    %1481 = vmatpush1.bf16.msra.mxu0 %v957
    %1482 = vmatprep.subr.bf16.mxu0 %v962
    %1483 = vmatpush1.bf16.msra.mxu0 %v961
    %1484 = vmatprep.subr.bf16.mxu0 %v966
    %1485 = vmatpush1.bf16.msra.mxu0 %v965
    %1486 = vmatprep.subr.bf16.mxu0 %v970
    %1487 = vmatpush1.bf16.msra.mxu0 %v969
    %1488 = vmatprep.subr.bf16.mxu0 %v974
    %1489 = vmatpush1.bf16.msra.mxu0 %v973
    %1490 = vmatprep.subr.bf16.mxu0 %v978
    %1491 = vmatpush1.bf16.msra.mxu0 %v977
    %1492 = vmatprep.subr.bf16.mxu0 %v982
    %1493 = vmatpush1.bf16.msra.mxu0 %v981
    %1494 = vmatprep.subr.bf16.mxu0 %v986
    %1495 = vmatpush1.bf16.msra.mxu0 %v985
    %1496 = vmatprep.subr.bf16.mxu0 %v990
    %1497 = vmatpush1.bf16.msra.mxu0 %v989
    %1498 = vmatprep.subr.bf16.mxu0 %v994
    %1499 = vmatpush1.bf16.msra.mxu0 %v993
    %1500 = vmatprep.subr.bf16.mxu0 %v998
    %1501 = vmatpush1.bf16.msra.mxu0 %v997
    %1502 = vmatprep.subr.bf16.mxu0 %v1002
    %1503 = vmatpush1.bf16.msra.mxu0 %v1001
    %1504 = vmatprep.subr.bf16.mxu0 %v1006
    %1505 = vmatpush1.bf16.msra.mxu0 %v1005
    %1506 = vmatprep.mubr.bf16.mxu0 %v434
    %1507 = vmatmul.mubr.bf16.gmra.mrb[0].mxu0 %v433
    %v1508 = vpop.f32.mrb[0].mxu0
    %v1509 = vadd.f32 %v1396, %v1508
    %v1510 = vpop.f32.mrb[0].mxu0
    %v1511 = vadd.f32 %v1398, %v1510
    %v1512 = vpop.f32.mrb[0].mxu0
    %v1513 = vadd.f32 %v1400, %v1512
    %v1514 = vpop.f32.mrb[0].mxu0
    %v1515 = vadd.f32 %v1402, %v1514
    %1516 = vmatprep.mubr.bf16.mxu0 %v438
    %1517 = vmatmul.mubr.bf16.gmra.mrb[0].mxu0 %v437
    %v1518 = vpop.f32.mrb[0].mxu0
    %v1519 = vadd.f32 %v1406, %v1518
    %v1520 = vpop.f32.mrb[0].mxu0
    %v1521 = vadd.f32 %v1408, %v1520
    %v1522 = vpop.f32.mrb[0].mxu0
    %v1523 = vadd.f32 %v1410, %v1522
    %v1524 = vpop.f32.mrb[0].mxu0
    %v1525 = vadd.f32 %v1412, %v1524
    %1526 = vmatprep.mubr.bf16.mxu0 %v442
    %1527 = vmatmul.mubr.bf16.gmra.mrb[0].mxu0 %v441
    %v1528 = vpop.f32.mrb[0].mxu0
    %v1529 = vadd.f32 %v1416, %v1528
    %v1530 = vpop.f32.mrb[0].mxu0
    %v1531 = vadd.f32 %v1418, %v1530
    %v1532 = vpop.f32.mrb[0].mxu0
    %v1533 = vadd.f32 %v1420, %v1532
    %v1534 = vpop.f32.mrb[0].mxu0
    %v1535 = vadd.f32 %v1422, %v1534
    %1536 = vmatprep.mubr.bf16.mxu0 %v446
    %1537 = vmatmul.mubr.bf16.gmra.mrb[0].mxu0 %v445
    %v1538 = vpop.f32.mrb[0].mxu0
    %v1539 = vadd.f32 %v1426, %v1538
    %v1540 = vpop.f32.mrb[0].mxu0
    %v1541 = vadd.f32 %v1428, %v1540
    %v1542 = vpop.f32.mrb[0].mxu0
    %v1543 = vadd.f32 %v1430, %v1542
    %v1544 = vpop.f32.mrb[0].mxu0
    %v1545 = vadd.f32 %v1432, %v1544
    %1546 = vmatprep.mubr.bf16.mxu0 %v450
    %1547 = vmatmul.mubr.bf16.gmra.mrb[0].mxu0 %v449
    %v1548 = vpop.f32.mrb[0].mxu0
    %v1549 = vadd.f32 %v1436, %v1548
    %v1550 = vpop.f32.mrb[0].mxu0
    %v1551 = vadd.f32 %v1438, %v1550
    %v1552 = vpop.f32.mrb[0].mxu0
    %v1553 = vadd.f32 %v1440, %v1552
    %v1554 = vpop.f32.mrb[0].mxu0
    %v1555 = vadd.f32 %v1442, %v1554
    %1556 = vmatprep.mubr.bf16.mxu0 %v454
    %1557 = vmatmul.mubr.bf16.gmra.mrb[0].mxu0 %v453
    %v1558 = vpop.f32.mrb[0].mxu0
    %v1559 = vadd.f32 %v1446, %v1558
    %v1560 = vpop.f32.mrb[0].mxu0
    %v1561 = vadd.f32 %v1448, %v1560
    %v1562 = vpop.f32.mrb[0].mxu0
    %v1563 = vadd.f32 %v1450, %v1562
    %v1564 = vpop.f32.mrb[0].mxu0
    %v1565 = vadd.f32 %v1452, %v1564
    %1566 = vmatprep.mubr.bf16.mxu0 %v458
    %1567 = vmatmul.mubr.bf16.gmra.mrb[0].mxu0 %v457
    %v1568 = vpop.f32.mrb[0].mxu0
    %v1569 = vadd.f32 %v1456, %v1568
    %v1570 = vpop.f32.mrb[0].mxu0
    %v1571 = vadd.f32 %v1458, %v1570
    %v1572 = vpop.f32.mrb[0].mxu0
    %v1573 = vadd.f32 %v1460, %v1572
    %v1574 = vpop.f32.mrb[0].mxu0
    %v1575 = vadd.f32 %v1462, %v1574
    %1576 = vmatprep.mubr.bf16.mxu0 %v462
    %1577 = vmatmul.mubr.bf16.gmra.mrb[0].mxu0 %v461
    %v1578 = vpop.f32.mrb[0].mxu0
    %v1579 = vadd.f32 %v1466, %v1578
    %v1580 = vpop.f32.mrb[0].mxu0
    %v1581 = vadd.f32 %v1468, %v1580
    %v1582 = vpop.f32.mrb[0].mxu0
    %v1583 = vadd.f32 %v1470, %v1582
    %v1584 = vpop.f32.mrb[0].mxu0
    %v1585 = vadd.f32 %v1472, %v1584
    %1586 = vdwg.mxu0
    %v1587 = vadd.f32 %v111, %v1283
    %v1588 = vadd.f32 %v112, %v1285
    %v1589 = vadd.f32 %v113, %v1509
    %v1590 = vadd.f32 %v114, %v1511
    %v1591 = vadd.f32 %v115, %v1287
    %v1592 = vadd.f32 %v116, %v1289
    %v1593 = vadd.f32 %v117, %v1513
    %v1594 = vadd.f32 %v118, %v1515
    %v1595 = vadd.f32 %v119, %v1293
    %v1596 = vadd.f32 %v120, %v1295
    %v1597 = vadd.f32 %v121, %v1519
    %v1598 = vadd.f32 %v122, %v1521
    %v1599 = vadd.f32 %v123, %v1297
    %v1600 = vadd.f32 %v124, %v1299
    %v1601 = vadd.f32 %v125, %v1523
    %v1602 = vadd.f32 %v126, %v1525
    %v1603 = vadd.f32 %v127, %v1303
    %v1604 = vadd.f32 %v128, %v1305
    %v1605 = vadd.f32 %v129, %v1529
    %v1606 = vadd.f32 %v130, %v1531
    %v1607 = vadd.f32 %v131, %v1307
    %v1608 = vadd.f32 %v132, %v1309
    %v1609 = vadd.f32 %v133, %v1533
    %v1610 = vadd.f32 %v134, %v1535
    %v1611 = vadd.f32 %v135, %v1313
    %v1612 = vadd.f32 %v136, %v1315
    %v1613 = vadd.f32 %v137, %v1539
    %v1614 = vadd.f32 %v138, %v1541
    %v1615 = vadd.f32 %v139, %v1317
    %v1616 = vadd.f32 %v140, %v1319
    %v1617 = vadd.f32 %v141, %v1543
    %v1618 = vadd.f32 %v142, %v1545
    %v1619 = vadd.f32 %v143, %v1323
    %v1620 = vadd.f32 %v144, %v1325
    %v1621 = vadd.f32 %v145, %v1549
    %v1622 = vadd.f32 %v146, %v1551
    %v1623 = vadd.f32 %v147, %v1327
    %v1624 = vadd.f32 %v148, %v1329
    %v1625 = vadd.f32 %v149, %v1553
    %v1626 = vadd.f32 %v150, %v1555
    %v1627 = vadd.f32 %v151, %v1333
    %v1628 = vadd.f32 %v152, %v1335
    %v1629 = vadd.f32 %v153, %v1559
    %v1630 = vadd.f32 %v154, %v1561
    %v1631 = vadd.f32 %v155, %v1337
    %v1632 = vadd.f32 %v156, %v1339
    %v1633 = vadd.f32 %v157, %v1563
    %v1634 = vadd.f32 %v158, %v1565
    %v1635 = vadd.f32 %v159, %v1343
    %v1636 = vadd.f32 %v160, %v1345
    %v1637 = vadd.f32 %v161, %v1569
    %v1638 = vadd.f32 %v162, %v1571
    %v1639 = vadd.f32 %v163, %v1347
    %v1640 = vadd.f32 %v164, %v1349
    %v1641 = vadd.f32 %v165, %v1573
    %v1642 = vadd.f32 %v166, %v1575
    %v1643 = vadd.f32 %v167, %v1353
    %v1644 = vadd.f32 %v168, %v1355
    %v1645 = vadd.f32 %v169, %v1579
    %v1646 = vadd.f32 %v170, %v1581
    %v1647 = vadd.f32 %v171, %v1357
    %v1648 = vadd.f32 %v172, %v1359
    %v1649 = vadd.f32 %v173, %v1583
    %v1650 = vadd.f32 %v174, %v1585
    %1651 = vst [vmem:[#allocation2] sm:$0xff] %v1587
    %1652 = vst [vmem:[#allocation2 + $0x8] sm:$0xff] %v1588
    %1653 = vst [vmem:[#allocation2 + $0x10] sm:$0xff] %v1589
    %1654 = vst [vmem:[#allocation2 + $0x18] sm:$0xff] %v1590
    %1655 = vst [vmem:[#allocation2 + $0x20] sm:$0xff] %v1591
    %1656 = vst [vmem:[#allocation2 + $0x28] sm:$0xff] %v1592
    %1657 = vst [vmem:[#allocation2 + $0x30] sm:$0xff] %v1593
    %1658 = vst [vmem:[#allocation2 + $0x38] sm:$0xff] %v1594
    %1659 = vst [vmem:[#allocation2 + $0x40] sm:$0xff] %v1595
    %1660 = vst [vmem:[#allocation2 + $0x48] sm:$0xff] %v1596
    %1661 = vst [vmem:[#allocation2 + $0x50] sm:$0xff] %v1597
    %1662 = vst [vmem:[#allocation2 + $0x58] sm:$0xff] %v1598
    %1663 = vst [vmem:[#allocation2 + $0x60] sm:$0xff] %v1599
    %1664 = vst [vmem:[#allocation2 + $0x68] sm:$0xff] %v1600
    %1665 = vst [vmem:[#allocation2 + $0x70] sm:$0xff] %v1601
    %1666 = vst [vmem:[#allocation2 + $0x78] sm:$0xff] %v1602
    %1667 = vst [vmem:[#allocation2 + $0x80] sm:$0xff] %v1603
    %1668 = vst [vmem:[#allocation2 + $0x88] sm:$0xff] %v1604
    %1669 = vst [vmem:[#allocation2 + $0x90] sm:$0xff] %v1605
    %1670 = vst [vmem:[#allocation2 + $0x98] sm:$0xff] %v1606
    %1671 = vst [vmem:[#allocation2 + $0xa0] sm:$0xff] %v1607
    %1672 = vst [vmem:[#allocation2 + $0xa8] sm:$0xff] %v1608
    %1673 = vst [vmem:[#allocation2 + $0xb0] sm:$0xff] %v1609
    %1674 = vst [vmem:[#allocation2 + $0xb8] sm:$0xff] %v1610
    %1675 = vst [vmem:[#allocation2 + $0xc0] sm:$0xff] %v1611
    %1676 = vst [vmem:[#allocation2 + $0xc8] sm:$0xff] %v1612
    %1677 = vst [vmem:[#allocation2 + $0xd0] sm:$0xff] %v1613
    %1678 = vst [vmem:[#allocation2 + $0xd8] sm:$0xff] %v1614
    %1679 = vst [vmem:[#allocation2 + $0xe0] sm:$0xff] %v1615
    %1680 = vst [vmem:[#allocation2 + $0xe8] sm:$0xff] %v1616
    %1681 = vst [vmem:[#allocation2 + $0xf0] sm:$0xff] %v1617
    %1682 = vst [vmem:[#allocation2 + $0xf8] sm:$0xff] %v1618
    %1683 = vst [vmem:[#allocation2 + $0x100] sm:$0xff] %v1619
    %1684 = vst [vmem:[#allocation2 + $0x108] sm:$0xff] %v1620
    %1685 = vst [vmem:[#allocation2 + $0x110] sm:$0xff] %v1621
    %1686 = vst [vmem:[#allocation2 + $0x118] sm:$0xff] %v1622
    %1687 = vst [vmem:[#allocation2 + $0x120] sm:$0xff] %v1623
    %1688 = vst [vmem:[#allocation2 + $0x128] sm:$0xff] %v1624
    %1689 = vst [vmem:[#allocation2 + $0x130] sm:$0xff] %v1625
    %1690 = vst [vmem:[#allocation2 + $0x138] sm:$0xff] %v1626
    %1691 = vst [vmem:[#allocation2 + $0x140] sm:$0xff] %v1627
    %1692 = vst [vmem:[#allocation2 + $0x148] sm:$0xff] %v1628
    %1693 = vst [vmem:[#allocation2 + $0x150] sm:$0xff] %v1629
    %1694 = vst [vmem:[#allocation2 + $0x158] sm:$0xff] %v1630
    %1695 = vst [vmem:[#allocation2 + $0x160] sm:$0xff] %v1631
    %1696 = vst [vmem:[#allocation2 + $0x168] sm:$0xff] %v1632
    %1697 = vst [vmem:[#allocation2 + $0x170] sm:$0xff] %v1633
    %1698 = vst [vmem:[#allocation2 + $0x178] sm:$0xff] %v1634
    %1699 = vst [vmem:[#allocation2 + $0x180] sm:$0xff] %v1635
    %1700 = vst [vmem:[#allocation2 + $0x188] sm:$0xff] %v1636
    %1701 = vst [vmem:[#allocation2 + $0x190] sm:$0xff] %v1637
    %1702 = vst [vmem:[#allocation2 + $0x198] sm:$0xff] %v1638
    %1703 = vst [vmem:[#allocation2 + $0x1a0] sm:$0xff] %v1639
    %1704 = vst [vmem:[#allocation2 + $0x1a8] sm:$0xff] %v1640
    %1705 = vst [vmem:[#allocation2 + $0x1b0] sm:$0xff] %v1641
    %1706 = vst [vmem:[#allocation2 + $0x1b8] sm:$0xff] %v1642
    %1707 = vst [vmem:[#allocation2 + $0x1c0] sm:$0xff] %v1643
    %1708 = vst [vmem:[#allocation2 + $0x1c8] sm:$0xff] %v1644
    %1709 = vst [vmem:[#allocation2 + $0x1d0] sm:$0xff] %v1645
    %1710 = vst [vmem:[#allocation2 + $0x1d8] sm:$0xff] %v1646
    %1711 = vst [vmem:[#allocation2 + $0x1e0] sm:$0xff] %v1647
    %1712 = vst [vmem:[#allocation2 + $0x1e8] sm:$0xff] %v1648
    %1713 = vst [vmem:[#allocation2 + $0x1f0] sm:$0xff] %v1649
    %1714 = vst [vmem:[#allocation2 + $0x1f8] sm:$0xff] %v1650
    // Predicated region
    $region26: #{tpu_custom_call.1} parent=1 // pred_check
      %p1715 = pneg %p43
    $region27: #{tpu_custom_call.1} parent=1 // pred_check_branch
      %1717 = sbr.rel (%p1715) target = $region29
    $region28: #{tpu_custom_call.1} parent=1 // pred_region
      %v1718 = vld [vmem:[#allocation2] sm:$0xff]
      %v1719 = vld [vmem:[#allocation2 + $0x8] sm:$0xff]
      %v1720 = vld [vmem:[#allocation2 + $0x10] sm:$0xff]
      %v1721 = vld [vmem:[#allocation2 + $0x18] sm:$0xff]
      %v1722 = vld [vmem:[#allocation2 + $0x20] sm:$0xff]
      %v1723 = vld [vmem:[#allocation2 + $0x28] sm:$0xff]
      %v1724 = vld [vmem:[#allocation2 + $0x30] sm:$0xff]
      %v1725 = vld [vmem:[#allocation2 + $0x38] sm:$0xff]
      %v1726 = vld [vmem:[#allocation2 + $0x40] sm:$0xff]
      %v1727 = vld [vmem:[#allocation2 + $0x48] sm:$0xff]
      %v1728 = vld [vmem:[#allocation2 + $0x50] sm:$0xff]
      %v1729 = vld [vmem:[#allocation2 + $0x58] sm:$0xff]
      %v1730 = vld [vmem:[#allocation2 + $0x60] sm:$0xff]
      %v1731 = vld [vmem:[#allocation2 + $0x68] sm:$0xff]
      %v1732 = vld [vmem:[#allocation2 + $0x70] sm:$0xff]
      %v1733 = vld [vmem:[#allocation2 + $0x78] sm:$0xff]
      %v1734 = vld [vmem:[#allocation2 + $0x80] sm:$0xff]
      %v1735 = vld [vmem:[#allocation2 + $0x88] sm:$0xff]
      %v1736 = vld [vmem:[#allocation2 + $0x90] sm:$0xff]
      %v1737 = vld [vmem:[#allocation2 + $0x98] sm:$0xff]
      %v1738 = vld [vmem:[#allocation2 + $0xa0] sm:$0xff]
      %v1739 = vld [vmem:[#allocation2 + $0xa8] sm:$0xff]
      %v1740 = vld [vmem:[#allocation2 + $0xb0] sm:$0xff]
      %v1741 = vld [vmem:[#allocation2 + $0xb8] sm:$0xff]
      %v1742 = vld [vmem:[#allocation2 + $0xc0] sm:$0xff]
      %v1743 = vld [vmem:[#allocation2 + $0xc8] sm:$0xff]
      %v1744 = vld [vmem:[#allocation2 + $0xd0] sm:$0xff]
      %v1745 = vld [vmem:[#allocation2 + $0xd8] sm:$0xff]
      %v1746 = vld [vmem:[#allocation2 + $0xe0] sm:$0xff]
      %v1747 = vld [vmem:[#allocation2 + $0xe8] sm:$0xff]
      %v1748 = vld [vmem:[#allocation2 + $0xf0] sm:$0xff]
      %v1749 = vld [vmem:[#allocation2 + $0xf8] sm:$0xff]
      %v1750 = vld [vmem:[#allocation2 + $0x100] sm:$0xff]
      %v1751 = vld [vmem:[#allocation2 + $0x108] sm:$0xff]
      %v1752 = vld [vmem:[#allocation2 + $0x110] sm:$0xff]
      %v1753 = vld [vmem:[#allocation2 + $0x118] sm:$0xff]
      %v1754 = vld [vmem:[#allocation2 + $0x120] sm:$0xff]
      %v1755 = vld [vmem:[#allocation2 + $0x128] sm:$0xff]
      %v1756 = vld [vmem:[#allocation2 + $0x130] sm:$0xff]
      %v1757 = vld [vmem:[#allocation2 + $0x138] sm:$0xff]
      %v1758 = vld [vmem:[#allocation2 + $0x140] sm:$0xff]
      %v1759 = vld [vmem:[#allocation2 + $0x148] sm:$0xff]
      %v1760 = vld [vmem:[#allocation2 + $0x150] sm:$0xff]
      %v1761 = vld [vmem:[#allocation2 + $0x158] sm:$0xff]
      %v1762 = vld [vmem:[#allocation2 + $0x160] sm:$0xff]
      %v1763 = vld [vmem:[#allocation2 + $0x168] sm:$0xff]
      %v1764 = vld [vmem:[#allocation2 + $0x170] sm:$0xff]
      %v1765 = vld [vmem:[#allocation2 + $0x178] sm:$0xff]
      %v1766 = vld [vmem:[#allocation2 + $0x180] sm:$0xff]
      %v1767 = vld [vmem:[#allocation2 + $0x188] sm:$0xff]
      %v1768 = vld [vmem:[#allocation2 + $0x190] sm:$0xff]
      %v1769 = vld [vmem:[#allocation2 + $0x198] sm:$0xff]
      %v1770 = vld [vmem:[#allocation2 + $0x1a0] sm:$0xff]
      %v1771 = vld [vmem:[#allocation2 + $0x1a8] sm:$0xff]
      %v1772 = vld [vmem:[#allocation2 + $0x1b0] sm:$0xff]
      %v1773 = vld [vmem:[#allocation2 + $0x1b8] sm:$0xff]
      %v1774 = vld [vmem:[#allocation2 + $0x1c0] sm:$0xff]
      %v1775 = vld [vmem:[#allocation2 + $0x1c8] sm:$0xff]
      %v1776 = vld [vmem:[#allocation2 + $0x1d0] sm:$0xff]
      %v1777 = vld [vmem:[#allocation2 + $0x1d8] sm:$0xff]
      %v1778 = vld [vmem:[#allocation2 + $0x1e0] sm:$0xff]
      %v1779 = vld [vmem:[#allocation2 + $0x1e8] sm:$0xff]
      %v1780 = vld [vmem:[#allocation2 + $0x1f0] sm:$0xff]
      %v1781 = vld [vmem:[#allocation2 + $0x1f8] sm:$0xff]
      %v1782 = vld [vmem:[%s2] sm:$0xf]
      %v1784 = vlaneseq
      %v1785 = vshrl.u32 %v1784, 7
      %v1786 = vsub.s32 0, %v1785
      %v1787 = vrot.slane %v1782, %v1786
      %v1788 = vlaneseq
      %v1789 = vshrl.u32 %v1788, 7
      %v1790 = vsub.s32 1, %v1789
      %v1791 = vrot.slane %v1782, %v1790
      %v1792 = vlaneseq
      %v1793 = vshrl.u32 %v1792, 7
      %v1794 = vsub.s32 2, %v1793
      %v1795 = vrot.slane %v1782, %v1794
      %v1796 = vlaneseq
      %v1797 = vshrl.u32 %v1796, 7
      %v1798 = vsub.s32 3, %v1797
      %v1799 = vrot.slane %v1782, %v1798
      %v1804 = vadd.f32 %v1718, %v1787
      %v1805 = vadd.f32 %v1719, %v1791
      %v1806 = vadd.f32 %v1720, %v1795
      %v1807 = vadd.f32 %v1721, %v1799
      %v1808 = vadd.f32 %v1722, %v1787
      %v1809 = vadd.f32 %v1723, %v1791
      %v1810 = vadd.f32 %v1724, %v1795
      %v1811 = vadd.f32 %v1725, %v1799
      %v1812 = vadd.f32 %v1726, %v1787
      %v1813 = vadd.f32 %v1727, %v1791
      %v1814 = vadd.f32 %v1728, %v1795
      %v1815 = vadd.f32 %v1729, %v1799
      %v1816 = vadd.f32 %v1730, %v1787
      %v1817 = vadd.f32 %v1731, %v1791
      %v1818 = vadd.f32 %v1732, %v1795
      %v1819 = vadd.f32 %v1733, %v1799
      %v1820 = vadd.f32 %v1734, %v1787
      %v1821 = vadd.f32 %v1735, %v1791
      %v1822 = vadd.f32 %v1736, %v1795
      %v1823 = vadd.f32 %v1737, %v1799
      %v1824 = vadd.f32 %v1738, %v1787
      %v1825 = vadd.f32 %v1739, %v1791
      %v1826 = vadd.f32 %v1740, %v1795
      %v1827 = vadd.f32 %v1741, %v1799
      %v1828 = vadd.f32 %v1742, %v1787
      %v1829 = vadd.f32 %v1743, %v1791
      %v1830 = vadd.f32 %v1744, %v1795
      %v1831 = vadd.f32 %v1745, %v1799
      %v1832 = vadd.f32 %v1746, %v1787
      %v1833 = vadd.f32 %v1747, %v1791
      %v1834 = vadd.f32 %v1748, %v1795
      %v1835 = vadd.f32 %v1749, %v1799
      %v1836 = vadd.f32 %v1750, %v1787
      %v1837 = vadd.f32 %v1751, %v1791
      %v1838 = vadd.f32 %v1752, %v1795
      %v1839 = vadd.f32 %v1753, %v1799
      %v1840 = vadd.f32 %v1754, %v1787
      %v1841 = vadd.f32 %v1755, %v1791
      %v1842 = vadd.f32 %v1756, %v1795
      %v1843 = vadd.f32 %v1757, %v1799
      %v1844 = vadd.f32 %v1758, %v1787
      %v1845 = vadd.f32 %v1759, %v1791
      %v1846 = vadd.f32 %v1760, %v1795
      %v1847 = vadd.f32 %v1761, %v1799
      %v1848 = vadd.f32 %v1762, %v1787
      %v1849 = vadd.f32 %v1763, %v1791
      %v1850 = vadd.f32 %v1764, %v1795
      %v1851 = vadd.f32 %v1765, %v1799
      %v1852 = vadd.f32 %v1766, %v1787
      %v1853 = vadd.f32 %v1767, %v1791
      %v1854 = vadd.f32 %v1768, %v1795
      %v1855 = vadd.f32 %v1769, %v1799
      %v1856 = vadd.f32 %v1770, %v1787
      %v1857 = vadd.f32 %v1771, %v1791
      %v1858 = vadd.f32 %v1772, %v1795
      %v1859 = vadd.f32 %v1773, %v1799
      %v1860 = vadd.f32 %v1774, %v1787
      %v1861 = vadd.f32 %v1775, %v1791
      %v1862 = vadd.f32 %v1776, %v1795
      %v1863 = vadd.f32 %v1777, %v1799
      %v1864 = vadd.f32 %v1778, %v1787
      %v1865 = vadd.f32 %v1779, %v1791
      %v1866 = vadd.f32 %v1780, %v1795
      %v1867 = vadd.f32 %v1781, %v1799
      %v1868 = vpack.c.bf16 %v1808, %v1804
      %v1869 = vpack.c.bf16 %v1809, %v1805
      %v1870 = vpack.c.bf16 %v1810, %v1806
      %v1871 = vpack.c.bf16 %v1811, %v1807
      %v1872 = vpack.c.bf16 %v1816, %v1812
      %v1873 = vpack.c.bf16 %v1817, %v1813
      %v1874 = vpack.c.bf16 %v1818, %v1814
      %v1875 = vpack.c.bf16 %v1819, %v1815
      %v1876 = vpack.c.bf16 %v1824, %v1820
      %v1877 = vpack.c.bf16 %v1825, %v1821
      %v1878 = vpack.c.bf16 %v1826, %v1822
      %v1879 = vpack.c.bf16 %v1827, %v1823
      %v1880 = vpack.c.bf16 %v1832, %v1828
      %v1881 = vpack.c.bf16 %v1833, %v1829
      %v1882 = vpack.c.bf16 %v1834, %v1830
      %v1883 = vpack.c.bf16 %v1835, %v1831
      %v1884 = vpack.c.bf16 %v1840, %v1836
      %v1885 = vpack.c.bf16 %v1841, %v1837
      %v1886 = vpack.c.bf16 %v1842, %v1838
      %v1887 = vpack.c.bf16 %v1843, %v1839
      %v1888 = vpack.c.bf16 %v1848, %v1844
      %v1889 = vpack.c.bf16 %v1849, %v1845
      %v1890 = vpack.c.bf16 %v1850, %v1846
      %v1891 = vpack.c.bf16 %v1851, %v1847
      %v1892 = vpack.c.bf16 %v1856, %v1852
      %v1893 = vpack.c.bf16 %v1857, %v1853
      %v1894 = vpack.c.bf16 %v1858, %v1854
      %v1895 = vpack.c.bf16 %v1859, %v1855
      %v1896 = vpack.c.bf16 %v1864, %v1860
      %v1897 = vpack.c.bf16 %v1865, %v1861
      %v1898 = vpack.c.bf16 %v1866, %v1862
      %v1899 = vpack.c.bf16 %v1867, %v1863
      %v1932 = vunpack.c.l.b16 %v1868
      %v1933 = vunpack.c.l.b16 %v1869
      %v1934 = vunpack.c.l.b16 %v1870
      %v1935 = vunpack.c.l.b16 %v1871
      %v1936 = vunpack.c.h.b16 %v1868
      %v1937 = vunpack.c.h.b16 %v1869
      %v1938 = vunpack.c.h.b16 %v1870
      %v1939 = vunpack.c.h.b16 %v1871
      %v1940 = vunpack.c.l.b16 %v1872
      %v1941 = vunpack.c.l.b16 %v1873
      %v1942 = vunpack.c.l.b16 %v1874
      %v1943 = vunpack.c.l.b16 %v1875
      %v1944 = vunpack.c.h.b16 %v1872
      %v1945 = vunpack.c.h.b16 %v1873
      %v1946 = vunpack.c.h.b16 %v1874
      %v1947 = vunpack.c.h.b16 %v1875
      %v1948 = vunpack.c.l.b16 %v1876
      %v1949 = vunpack.c.l.b16 %v1877
      %v1950 = vunpack.c.l.b16 %v1878
      %v1951 = vunpack.c.l.b16 %v1879
      %v1952 = vunpack.c.h.b16 %v1876
      %v1953 = vunpack.c.h.b16 %v1877
      %v1954 = vunpack.c.h.b16 %v1878
      %v1955 = vunpack.c.h.b16 %v1879
      %v1956 = vunpack.c.l.b16 %v1880
      %v1957 = vunpack.c.l.b16 %v1881
      %v1958 = vunpack.c.l.b16 %v1882
      %v1959 = vunpack.c.l.b16 %v1883
      %v1960 = vunpack.c.h.b16 %v1880
      %v1961 = vunpack.c.h.b16 %v1881
      %v1962 = vunpack.c.h.b16 %v1882
      %v1963 = vunpack.c.h.b16 %v1883
      %v1964 = vunpack.c.l.b16 %v1884
      %v1965 = vunpack.c.l.b16 %v1885
      %v1966 = vunpack.c.l.b16 %v1886
      %v1967 = vunpack.c.l.b16 %v1887
      %v1968 = vunpack.c.h.b16 %v1884
      %v1969 = vunpack.c.h.b16 %v1885
      %v1970 = vunpack.c.h.b16 %v1886
      %v1971 = vunpack.c.h.b16 %v1887
      %v1972 = vunpack.c.l.b16 %v1888
      %v1973 = vunpack.c.l.b16 %v1889
      %v1974 = vunpack.c.l.b16 %v1890
      %v1975 = vunpack.c.l.b16 %v1891
      %v1976 = vunpack.c.h.b16 %v1888
      %v1977 = vunpack.c.h.b16 %v1889
      %v1978 = vunpack.c.h.b16 %v1890
      %v1979 = vunpack.c.h.b16 %v1891
      %v1980 = vunpack.c.l.b16 %v1892
      %v1981 = vunpack.c.l.b16 %v1893
      %v1982 = vunpack.c.l.b16 %v1894
      %v1983 = vunpack.c.l.b16 %v1895
      %v1984 = vunpack.c.h.b16 %v1892
      %v1985 = vunpack.c.h.b16 %v1893
      %v1986 = vunpack.c.h.b16 %v1894
      %v1987 = vunpack.c.h.b16 %v1895
      %v1988 = vunpack.c.l.b16 %v1896
      %v1989 = vunpack.c.l.b16 %v1897
      %v1990 = vunpack.c.l.b16 %v1898
      %v1991 = vunpack.c.l.b16 %v1899
      %v1992 = vunpack.c.h.b16 %v1896
      %v1993 = vunpack.c.h.b16 %v1897
      %v1994 = vunpack.c.h.b16 %v1898
      %v1995 = vunpack.c.h.b16 %v1899
      %v1996 = vpack.c.b16 %v1933, %v1932
      %v1997 = vpack.c.b16 %v1935, %v1934
      %v1998 = vpack.c.b16 %v1937, %v1936
      %v1999 = vpack.c.b16 %v1939, %v1938
      %v2000 = vpack.c.b16 %v1941, %v1940
      %v2001 = vpack.c.b16 %v1943, %v1942
      %v2002 = vpack.c.b16 %v1945, %v1944
      %v2003 = vpack.c.b16 %v1947, %v1946
      %v2004 = vpack.c.b16 %v1949, %v1948
      %v2005 = vpack.c.b16 %v1951, %v1950
      %v2006 = vpack.c.b16 %v1953, %v1952
      %v2007 = vpack.c.b16 %v1955, %v1954
      %v2008 = vpack.c.b16 %v1957, %v1956
      %v2009 = vpack.c.b16 %v1959, %v1958
      %v2010 = vpack.c.b16 %v1961, %v1960
      %v2011 = vpack.c.b16 %v1963, %v1962
      %v2012 = vpack.c.b16 %v1965, %v1964
      %v2013 = vpack.c.b16 %v1967, %v1966
      %v2014 = vpack.c.b16 %v1969, %v1968
      %v2015 = vpack.c.b16 %v1971, %v1970
      %v2016 = vpack.c.b16 %v1973, %v1972
      %v2017 = vpack.c.b16 %v1975, %v1974
      %v2018 = vpack.c.b16 %v1977, %v1976
      %v2019 = vpack.c.b16 %v1979, %v1978
      %v2020 = vpack.c.b16 %v1981, %v1980
      %v2021 = vpack.c.b16 %v1983, %v1982
      %v2022 = vpack.c.b16 %v1985, %v1984
      %v2023 = vpack.c.b16 %v1987, %v1986
      %v2024 = vpack.c.b16 %v1989, %v1988
      %v2025 = vpack.c.b16 %v1991, %v1990
      %v2026 = vpack.c.b16 %v1993, %v1992
      %v2027 = vpack.c.b16 %v1995, %v1994
      %2060 = vst [vmem:[#allocation8] sm:$0xff] %v1996
      %2061 = vst [vmem:[#allocation8 + $0x8] sm:$0xff] %v1997
      %2062 = vst [vmem:[#allocation8 + $0x10] sm:$0xff] %v1998
      %2063 = vst [vmem:[#allocation8 + $0x18] sm:$0xff] %v1999
      %2064 = vst [vmem:[#allocation8 + $0x20] sm:$0xff] %v2000
      %2065 = vst [vmem:[#allocation8 + $0x28] sm:$0xff] %v2001
      %2066 = vst [vmem:[#allocation8 + $0x30] sm:$0xff] %v2002
      %2067 = vst [vmem:[#allocation8 + $0x38] sm:$0xff] %v2003
      %2068 = vst [vmem:[#allocation8 + $0x40] sm:$0xff] %v2004
      %2069 = vst [vmem:[#allocation8 + $0x48] sm:$0xff] %v2005
      %2070 = vst [vmem:[#allocation8 + $0x50] sm:$0xff] %v2006
      %2071 = vst [vmem:[#allocation8 + $0x58] sm:$0xff] %v2007
      %2072 = vst [vmem:[#allocation8 + $0x60] sm:$0xff] %v2008
      %2073 = vst [vmem:[#allocation8 + $0x68] sm:$0xff] %v2009
      %2074 = vst [vmem:[#allocation8 + $0x70] sm:$0xff] %v2010
      %2075 = vst [vmem:[#allocation8 + $0x78] sm:$0xff] %v2011
      %2076 = vst [vmem:[#allocation8 + $0x80] sm:$0xff] %v2012
      %2077 = vst [vmem:[#allocation8 + $0x88] sm:$0xff] %v2013
      %2078 = vst [vmem:[#allocation8 + $0x90] sm:$0xff] %v2014
      %2079 = vst [vmem:[#allocation8 + $0x98] sm:$0xff] %v2015
      %2080 = vst [vmem:[#allocation8 + $0xa0] sm:$0xff] %v2016
      %2081 = vst [vmem:[#allocation8 + $0xa8] sm:$0xff] %v2017
      %2082 = vst [vmem:[#allocation8 + $0xb0] sm:$0xff] %v2018
      %2083 = vst [vmem:[#allocation8 + $0xb8] sm:$0xff] %v2019
      %2084 = vst [vmem:[#allocation8 + $0xc0] sm:$0xff] %v2020
      %2085 = vst [vmem:[#allocation8 + $0xc8] sm:$0xff] %v2021
      %2086 = vst [vmem:[#allocation8 + $0xd0] sm:$0xff] %v2022
      %2087 = vst [vmem:[#allocation8 + $0xd8] sm:$0xff] %v2023
      %2088 = vst [vmem:[#allocation8 + $0xe0] sm:$0xff] %v2024
      %2089 = vst [vmem:[#allocation8 + $0xe8] sm:$0xff] %v2025
      %2090 = vst [vmem:[#allocation8 + $0xf0] sm:$0xff] %v2026
      %2091 = vst [vmem:[#allocation8 + $0xf8] sm:$0xff] %v2027
    $region29: #{tpu_custom_call.1} parent=1 // pred_fallthru
      _
    // Predicated region
    $region30: #{tpu_custom_call.1} parent=1 // pred_check
      _
    $region31: #{tpu_custom_call.1} parent=1 // pred_check_branch
      %2093 = sbr.rel (0) target = $region33
    $region32: #{tpu_custom_call.1} parent=1 // pred_region
      %s2095 = ssub.s32 4096, 4096
      %2096 = vsyncadd [#allocation5], %s2095
      %s2097 = sshll.u32 [#allocation8], 4
      %s2098 = int_to_ptr.vmem [resolvable:$true] %s2097
      %2103 = dma.vmem_to_hbm [thread:$0]  %s2098, 4096, %s3, [#allocation5], 256, 256, 16
    $region33: #{tpu_custom_call.1} parent=1 // pred_fallthru
      _
    // Predicated region
    $region34: #{tpu_custom_call.1} parent=1 // pred_check
      _
    $region35: #{tpu_custom_call.1} parent=1 // pred_check_branch
      %2105 = sbr.rel (0) target = $region37
    $region36: #{tpu_custom_call.1} parent=1 // pred_region
      %2106 = dma.done [#allocation5], 4096
    $region37: #{tpu_custom_call.1} parent=1 // pred_fallthru
      _
    %2107 = vsyncpa [#allocation4], 1
    %2108 = vsyncpa [#allocation7], 1
    %2109 = vsyncpa [#allocation5], 1

</llo_original>
